<compile_context>
chip_gen: v6e
topology: v6e:2x2x1
jax: 0.10.0
libtpu: 0.0.40
codegen_flags: <defaults>
</compile_context>

<pallas_src>
import functools

import jax
import jax.numpy as jnp
from jax.experimental import pallas as pl
from jax.experimental.pallas import tpu as pltpu


def _cnn_kernel(x_ref, p_ref, o_ref, *, kernel_size, pool_kernel, c_out, out_dim,
                length, l_pool):
    """Forward pass for one batch block; batch on the lane axis.

    x_ref : (L, Nb)       VMEM  input block (Cin == 1), batch on lanes
    p_ref : (P,)          SMEM  flat params:
                            [0, Cout*K)            conv weight  w[c*K + j] = conv_w[c, 0, j]
                            [+, +Cout)             conv bias
                            [+, +out_dim*Cout)     fc weight    w[d*Cout + c] = fc_w[d, c]
                            [+, +out_dim)          fc bias
    o_ref : (out_dim, Nb) VMEM  output block
    """
    x = x_ref[...].astype(jnp.float32)                          # (L, Nb)
    nb = x.shape[1]
    k = kernel_size

    # Shifted input taps via XLU roll (no unaligned sublane slices -> no relayout
    # copies).  Row l of x_sh[j] holds x[l + j]; wrapped rows only feed conv rows
    # >= l_out, which the pooling mask drops.
    x_sh = [x]
    for j in range(1, k):
        x_sh.append(pltpu.roll(x, shift=length - j, axis=0))

    # Pooling mask: rows l with l % pool_kernel == 0 and l < pool_kernel * l_pool,
    # pre-scaled by 1/l_pool so the masked sublane-sum is already the mean, i.e.
    # MaxPool1d(pool_kernel) followed by AdaptiveAvgPool1d(1).  Hoisted once.
    pos = jax.lax.broadcasted_iota(jnp.int32, (length, nb), 0)
    mask = jnp.where(
        jnp.logical_and(pos % pool_kernel == 0, pos < pool_kernel * l_pool),
        jnp.float32(1.0 / l_pool), jnp.float32(0.0))

    cw_off = 0
    cb_off = cw_off + c_out * k
    fw_off = cb_off + c_out
    fb_off = fw_off + out_dim * c_out

    out_acc = [None] * out_dim
    for c in range(c_out):
        # Conv1d (Cin == 1): K scalar(SMEM) x vreg broadcast MADs, lane-dense.
        yc = x_sh[0] * p_ref[cw_off + c * k]
        for j in range(1, k):
            yc = yc + x_sh[j] * p_ref[cw_off + c * k + j]
        yc = jnp.maximum(yc + p_ref[cb_off + c], 0.0)           # bias + ReLU

        # MaxPool1d(pool_kernel): pairwise max against rolled copies (XLU + VPU).
        pm = yc
        for j in range(1, pool_kernel):
            pm = jnp.maximum(pm, pltpu.roll(yc, shift=length - j, axis=0))

        # AdaptiveAvgPool1d(1): masked sublane-sum == mean of the pooled sequence.
        mc = jnp.sum(pm * mask, axis=0, keepdims=True)          # (1, Nb)

        # Linear(Cout -> out_dim): scalar-weighted accumulation of channel means.
        for d in range(out_dim):
            contrib = mc * p_ref[fw_off + d * c_out + c]
            out_acc[d] = contrib if out_acc[d] is None else out_acc[d] + contrib

    rows = [out_acc[d] + p_ref[fb_off + d] for d in range(out_dim)]
    o_ref[...] = jnp.concatenate(rows, axis=0).astype(o_ref.dtype)


def _pack_params(conv_w, conv_b, fc_w, fc_b):
    """Flatten all parameters into one f32 vector (lives in SMEM inside the kernel)."""
    return jnp.concatenate([
        conv_w[:, 0, :].reshape(-1).astype(jnp.float32),   # channel-major conv taps
        conv_b.reshape(-1).astype(jnp.float32),
        fc_w.reshape(-1).astype(jnp.float32),              # row-major fc weight
        fc_b.reshape(-1).astype(jnp.float32),
    ])


def _pick_batch_block(n128, target=4096):
    """Lane-dense batch block size (multiple of 128).

    `n128` is the batch size already rounded up to a multiple of 128.  Blocks are
    capped at `target` columns (~4K amortizes the ~0.35us/step overhead while the
    whole per-step working set stays ~ a few MiB, far below v5e's 16 MiB scoped
    VMEM default and v7x's 64 MiB physical VMEM) and, for large batches, sized so
    the grid has >= 2 steps so both v7x TensorCores get work under
    dimension_semantics=("parallel",).
    """
    if n128 <= 256:
        return n128
    blk = min(target, n128 // 2)
    return max(128, (blk // 128) * 128)


def minimal_cnn_forward(x_ncl, conv_w, conv_b, fc_w, fc_b, pool_kernel=2,
                        block_target=4096):
    """x_ncl: (N, 1, L) like PyTorch NCL.  Returns (N, out_dim) float32."""
    n, c_in, length = x_ncl.shape
    c_out, c_in_w, kernel_size = conv_w.shape
    out_dim = fc_w.shape[0]
    if c_in != 1 or c_in_w != 1:
        raise NotImplementedError("kernel specialises the module default input_ch=1")
    l_out = length - kernel_size + 1
    l_pool = l_out // pool_kernel
    if l_pool < 1:
        raise ValueError("need length >= kernel_size + pool_kernel - 1 "
                         "(otherwise AdaptiveAvgPool divides by zero)")

    # Batch onto the 128-lane axis: (N, 1, L) -> (L, N).  The reshape is free
    # (Cin == 1); the transpose is one cheap XLA pass feeding a VALU-bound kernel.
    # Batch is zero-padded to a lane-dense block multiple (robust for any N);
    # padded columns are pure zero-compute and get sliced off afterwards.
    x_ln = jnp.transpose(x_ncl.reshape(n, length), (1, 0)).astype(jnp.float32)
    n128 = ((max(n, 1) + 127) // 128) * 128
    n_blk = _pick_batch_block(n128, block_target)
    n_pad = ((n128 + n_blk - 1) // n_blk) * n_blk
    if n_pad != n:
        x_ln = jnp.pad(x_ln, ((0, 0), (0, n_pad - n)))
    grid = (n_pad // n_blk,)

    params = _pack_params(conv_w, conv_b, fc_w, fc_b)

    kernel = functools.partial(
        _cnn_kernel, kernel_size=kernel_size, pool_kernel=pool_kernel,
        c_out=c_out, out_dim=out_dim, length=length, l_pool=l_pool)

    # Advisory cost hint for XLA's scheduler around this small kernel.
    flops = 2 * n_pad * c_out * (length * (kernel_size + pool_kernel) + out_dim)
    bytes_accessed = 4 * (n_pad * length + n_pad * out_dim + int(params.size))

    out_t = pl.pallas_call(
        kernel,
        out_shape=jax.ShapeDtypeStruct((out_dim, n_pad), jnp.float32),
        grid_spec=pltpu.PrefetchScalarGridSpec(
            num_scalar_prefetch=0,
            grid=grid,
            in_specs=[
                pl.BlockSpec((length, n_blk), lambda i: (0, i)),         # lane-dense x
                pl.BlockSpec(memory_space=pltpu.MemorySpace.SMEM),       # flat params
            ],
            out_specs=pl.BlockSpec((out_dim, n_blk), lambda i: (0, i)),  # lane-dense out
        ),
        compiler_params=pltpu.CompilerParams(
            dimension_semantics=("parallel",),     # shards batch across TCs on v7x
            vmem_limit_bytes=32 * 1024 * 1024),
        cost_estimate=pl.CostEstimate(
            flops=int(flops), transcendentals=0, bytes_accessed=int(bytes_accessed)),
    )(x_ln, params)

    # (out_dim, N_pad) -> (N, out_dim); padded columns dropped.
    return jnp.transpose(out_t[:, :n], (1, 0))


def _ref_forward(x, conv_w, conv_b, fc_w, fc_b, pool_kernel=2):
    """Pure-JAX reference mirroring the PyTorch module."""
    y = jax.lax.conv_general_dilated(
        x, conv_w, window_strides=(1,), padding="VALID",
        dimension_numbers=("NCH", "OIH", "NCH"))
    y = y + conv_b[None, :, None]
    y = jnp.maximum(y, 0.0)
    lp = y.shape[-1] // pool_kernel
    y = y[:, :, :lp * pool_kernel].reshape(y.shape[0], y.shape[1], lp, pool_kernel)
    y = y.max(axis=-1)           # MaxPool1d
    y = y.mean(axis=-1)          # AdaptiveAvgPool1d(1) + Flatten
    return y @ fc_w.T + fc_b     # Linear


if __name__ == "__main__":
    # Module hyperparameters (defaults of minimalCNN).
    input_ch, out_ch, kernel_size, pool_kernel, output_dim = 1, 16, 3, 2, 2
    batch, length = 2, 16

    key = jax.random.PRNGKey(0)
    k_x, k_cw, k_cb, k_fw, k_fb, k_x2 = jax.random.split(key, 6)

    # Deterministic synthetic parameters (shapes match nn.Conv1d / nn.Linear).
    conv_w = jax.random.normal(k_cw, (out_ch, input_ch, kernel_size), jnp.float32) * 0.1
    conv_b = jax.random.normal(k_cb, (out_ch,), jnp.float32) * 0.1
    fc_w = jax.random.normal(k_fw, (output_dim, out_ch), jnp.float32) * 0.1
    fc_b = jax.random.normal(k_fb, (output_dim,), jnp.float32) * 0.1

    x = jax.random.normal(k_x, (batch, input_ch, length), jnp.float32)

    out = minimal_cnn_forward(x, conv_w, conv_b, fc_w, fc_b, pool_kernel=pool_kernel)
    out = jax.block_until_ready(out)
    ref = _ref_forward(x, conv_w, conv_b, fc_w, fc_b, pool_kernel=pool_kernel)
    assert out.shape == (batch, output_dim)
    assert jnp.allclose(out, ref, atol=1e-5, rtol=1e-5), (out, ref)

    # Also exercise the padded, multi-step-grid path (batch not a multiple of 128).
    x2 = jax.random.normal(k_x2, (300, input_ch, length), jnp.float32)
    out2 = jax.block_until_ready(
        minimal_cnn_forward(x2, conv_w, conv_b, fc_w, fc_b, pool_kernel=pool_kernel))
    ref2 = _ref_forward(x2, conv_w, conv_b, fc_w, fc_b, pool_kernel=pool_kernel)
    assert out2.shape == (300, output_dim)
    assert jnp.allclose(out2, ref2, atol=1e-5, rtol=1e-5)

    print("KERNEL_OK")
</pallas_src>

<mosaic_0001>
module attributes {stable_mosaic.version = 11 : i64} {
  func.func @_cnn_kernel(%arg0: i32, %arg1: memref<16x128xf32, #tpu.memory_space<vmem>>, %arg2: memref<98xf32, #tpu.memory_space<smem>>, %arg3: memref<2x128xf32, #tpu.memory_space<vmem>>) attributes {dimension_semantics = [#tpu.dimension_semantics<parallel>], iteration_bounds = array<i64: 1>, scalar_prefetch = 0 : i64, scratch_operands = 0 : i64, tpu.core_type = #tpu.core_type<tc>, window_params = [{transform_indices = @transform_0, window_bounds = array<i64: 16, 128>}, {transform_indices = @transform_1, window_bounds = array<i64: 98>}, {transform_indices = @transform_2, window_bounds = array<i64: 2, 128>}]} {
    %c0 = arith.constant 0 : index
    %c0_0 = arith.constant 0 : index
    %0 = vector.load %arg1[%c0, %c0_0] : memref<16x128xf32, #tpu.memory_space<vmem>>, vector<16x128xf32>
    %c15_i32 = arith.constant 15 : i32
    %1 = tpu.dynamic_rotate %0 by %c15_i32 dim 0 : vector<16x128xf32>, i32 -> vector<16x128xf32>
    %c14_i32 = arith.constant 14 : i32
    %2 = tpu.dynamic_rotate %0 by %c14_i32 dim 0 : vector<16x128xf32>, i32 -> vector<16x128xf32>
    %3 = tpu.iota {dimensions = array<i32: 0>} : vector<16x128xi32>
    %c2_i32 = arith.constant 2 : i32
    %c0_i32 = arith.constant 0 : i32
    %4 = arith.cmpi eq, %c2_i32, %c0_i32 : i32
    %c1_i32 = arith.constant 1 : i32
    %5 = arith.select %4, %c1_i32, %c2_i32 : i32
    %6 = vector.broadcast %5 : i32 to vector<16x128xi32>
    %7 = arith.remsi %3, %6 : vector<16x128xi32>
    %c0_i32_1 = arith.constant 0 : i32
    %8 = vector.broadcast %c0_i32_1 : i32 to vector<16x128xi32>
    %9 = arith.cmpi ne, %7, %8 : vector<16x128xi32>
    %c0_i32_2 = arith.constant 0 : i32
    %10 = vector.broadcast %c0_i32_2 : i32 to vector<16x128xi32>
    %11 = arith.cmpi slt, %7, %10 : vector<16x128xi32>
    %c0_i32_3 = arith.constant 0 : i32
    %12 = arith.cmpi slt, %5, %c0_i32_3 : i32
    %13 = vector.broadcast %12 : i1 to vector<16x128xi1>
    %14 = vector.broadcast %13 : vector<16x128xi1> to vector<16x128xi1>
    %15 = arith.xori %11, %14 : vector<16x128xi1>
    %16 = arith.andi %15, %9 : vector<16x128xi1>
    %17 = vector.broadcast %5 : i32 to vector<16x128xi32>
    %18 = arith.addi %7, %17 : vector<16x128xi32>
    %19 = arith.select %16, %18, %7 : vector<16x128xi1>, vector<16x128xi32>
    %c0_i32_4 = arith.constant 0 : i32
    %20 = vector.broadcast %c0_i32_4 : i32 to vector<16x128xi32>
    %21 = arith.cmpi eq, %19, %20 : vector<16x128xi32>
    %c14_i32_5 = arith.constant 14 : i32
    %22 = vector.broadcast %c14_i32_5 : i32 to vector<16x128xi32>
    %23 = arith.cmpi slt, %3, %22 : vector<16x128xi32>
    %24 = arith.andi %21, %23 : vector<16x128xi1>
    %cst = arith.constant 0.142857149 : f32
    %cst_6 = arith.constant 0.000000e+00 : f32
    %25 = vector.broadcast %cst : f32 to vector<16x128xf32>
    %26 = vector.broadcast %cst_6 : f32 to vector<16x128xf32>
    %27 = arith.select %24, %25, %26 : vector<16x128xi1>, vector<16x128xf32>
    %c0_7 = arith.constant 0 : index
    %28 = memref.load %arg2[%c0_7] : memref<98xf32, #tpu.memory_space<smem>>
    %29 = vector.broadcast %28 : f32 to vector<16x128xf32>
    %30 = arith.mulf %0, %29 : vector<16x128xf32>
    %c1 = arith.constant 1 : index
    %31 = memref.load %arg2[%c1] : memref<98xf32, #tpu.memory_space<smem>>
    %32 = vector.broadcast %31 : f32 to vector<16x128xf32>
    %33 = arith.mulf %1, %32 : vector<16x128xf32>
    %34 = arith.addf %30, %33 : vector<16x128xf32>
    %c2 = arith.constant 2 : index
    %35 = memref.load %arg2[%c2] : memref<98xf32, #tpu.memory_space<smem>>
    %36 = vector.broadcast %35 : f32 to vector<16x128xf32>
    %37 = arith.mulf %2, %36 : vector<16x128xf32>
    %38 = arith.addf %34, %37 : vector<16x128xf32>
    %c48 = arith.constant 48 : index
    %39 = memref.load %arg2[%c48] : memref<98xf32, #tpu.memory_space<smem>>
    %40 = vector.broadcast %39 : f32 to vector<16x128xf32>
    %41 = arith.addf %38, %40 : vector<16x128xf32>
    %cst_8 = arith.constant 0.000000e+00 : f32
    %42 = vector.broadcast %cst_8 : f32 to vector<16x128xf32>
    %43 = arith.maximumf %41, %42 : vector<16x128xf32>
    %c15_i32_9 = arith.constant 15 : i32
    %44 = tpu.dynamic_rotate %43 by %c15_i32_9 dim 0 : vector<16x128xf32>, i32 -> vector<16x128xf32>
    %45 = arith.maximumf %43, %44 : vector<16x128xf32>
    %46 = arith.mulf %45, %27 : vector<16x128xf32>
    %cst_10 = arith.constant dense<0.000000e+00> : vector<128xf32>
    %47 = vector.multi_reduction <add>, %46, %cst_10 [0] : vector<16x128xf32> to vector<128xf32>
    %48 = vector.shape_cast %47 : vector<128xf32> to vector<1x128xf32>
    %c64 = arith.constant 64 : index
    %49 = memref.load %arg2[%c64] : memref<98xf32, #tpu.memory_space<smem>>
    %50 = vector.broadcast %49 : f32 to vector<1x128xf32>
    %51 = arith.mulf %48, %50 : vector<1x128xf32>
    %c80 = arith.constant 80 : index
    %52 = memref.load %arg2[%c80] : memref<98xf32, #tpu.memory_space<smem>>
    %53 = vector.broadcast %52 : f32 to vector<1x128xf32>
    %54 = arith.mulf %48, %53 : vector<1x128xf32>
    %c3 = arith.constant 3 : index
    %55 = memref.load %arg2[%c3] : memref<98xf32, #tpu.memory_space<smem>>
    %56 = vector.broadcast %55 : f32 to vector<16x128xf32>
    %57 = arith.mulf %0, %56 : vector<16x128xf32>
    %c4 = arith.constant 4 : index
    %58 = memref.load %arg2[%c4] : memref<98xf32, #tpu.memory_space<smem>>
    %59 = vector.broadcast %58 : f32 to vector<16x128xf32>
    %60 = arith.mulf %1, %59 : vector<16x128xf32>
    %61 = arith.addf %57, %60 : vector<16x128xf32>
    %c5 = arith.constant 5 : index
    %62 = memref.load %arg2[%c5] : memref<98xf32, #tpu.memory_space<smem>>
    %63 = vector.broadcast %62 : f32 to vector<16x128xf32>
    %64 = arith.mulf %2, %63 : vector<16x128xf32>
    %65 = arith.addf %61, %64 : vector<16x128xf32>
    %c49 = arith.constant 49 : index
    %66 = memref.load %arg2[%c49] : memref<98xf32, #tpu.memory_space<smem>>
    %67 = vector.broadcast %66 : f32 to vector<16x128xf32>
    %68 = arith.addf %65, %67 : vector<16x128xf32>
    %cst_11 = arith.constant 0.000000e+00 : f32
    %69 = vector.broadcast %cst_11 : f32 to vector<16x128xf32>
    %70 = arith.maximumf %68, %69 : vector<16x128xf32>
    %c15_i32_12 = arith.constant 15 : i32
    %71 = tpu.dynamic_rotate %70 by %c15_i32_12 dim 0 : vector<16x128xf32>, i32 -> vector<16x128xf32>
    %72 = arith.maximumf %70, %71 : vector<16x128xf32>
    %73 = arith.mulf %72, %27 : vector<16x128xf32>
    %cst_13 = arith.constant dense<0.000000e+00> : vector<128xf32>
    %74 = vector.multi_reduction <add>, %73, %cst_13 [0] : vector<16x128xf32> to vector<128xf32>
    %75 = vector.shape_cast %74 : vector<128xf32> to vector<1x128xf32>
    %c65 = arith.constant 65 : index
    %76 = memref.load %arg2[%c65] : memref<98xf32, #tpu.memory_space<smem>>
    %77 = vector.broadcast %76 : f32 to vector<1x128xf32>
    %78 = arith.mulf %75, %77 : vector<1x128xf32>
    %79 = arith.addf %51, %78 : vector<1x128xf32>
    %c81 = arith.constant 81 : index
    %80 = memref.load %arg2[%c81] : memref<98xf32, #tpu.memory_space<smem>>
    %81 = vector.broadcast %80 : f32 to vector<1x128xf32>
    %82 = arith.mulf %75, %81 : vector<1x128xf32>
    %83 = arith.addf %54, %82 : vector<1x128xf32>
    %c6 = arith.constant 6 : index
    %84 = memref.load %arg2[%c6] : memref<98xf32, #tpu.memory_space<smem>>
    %85 = vector.broadcast %84 : f32 to vector<16x128xf32>
    %86 = arith.mulf %0, %85 : vector<16x128xf32>
    %c7 = arith.constant 7 : index
    %87 = memref.load %arg2[%c7] : memref<98xf32, #tpu.memory_space<smem>>
    %88 = vector.broadcast %87 : f32 to vector<16x128xf32>
    %89 = arith.mulf %1, %88 : vector<16x128xf32>
    %90 = arith.addf %86, %89 : vector<16x128xf32>
    %c8 = arith.constant 8 : index
    %91 = memref.load %arg2[%c8] : memref<98xf32, #tpu.memory_space<smem>>
    %92 = vector.broadcast %91 : f32 to vector<16x128xf32>
    %93 = arith.mulf %2, %92 : vector<16x128xf32>
    %94 = arith.addf %90, %93 : vector<16x128xf32>
    %c50 = arith.constant 50 : index
    %95 = memref.load %arg2[%c50] : memref<98xf32, #tpu.memory_space<smem>>
    %96 = vector.broadcast %95 : f32 to vector<16x128xf32>
    %97 = arith.addf %94, %96 : vector<16x128xf32>
    %cst_14 = arith.constant 0.000000e+00 : f32
    %98 = vector.broadcast %cst_14 : f32 to vector<16x128xf32>
    %99 = arith.maximumf %97, %98 : vector<16x128xf32>
    %c15_i32_15 = arith.constant 15 : i32
    %100 = tpu.dynamic_rotate %99 by %c15_i32_15 dim 0 : vector<16x128xf32>, i32 -> vector<16x128xf32>
    %101 = arith.maximumf %99, %100 : vector<16x128xf32>
    %102 = arith.mulf %101, %27 : vector<16x128xf32>
    %cst_16 = arith.constant dense<0.000000e+00> : vector<128xf32>
    %103 = vector.multi_reduction <add>, %102, %cst_16 [0] : vector<16x128xf32> to vector<128xf32>
    %104 = vector.shape_cast %103 : vector<128xf32> to vector<1x128xf32>
    %c66 = arith.constant 66 : index
    %105 = memref.load %arg2[%c66] : memref<98xf32, #tpu.memory_space<smem>>
    %106 = vector.broadcast %105 : f32 to vector<1x128xf32>
    %107 = arith.mulf %104, %106 : vector<1x128xf32>
    %108 = arith.addf %79, %107 : vector<1x128xf32>
    %c82 = arith.constant 82 : index
    %109 = memref.load %arg2[%c82] : memref<98xf32, #tpu.memory_space<smem>>
    %110 = vector.broadcast %109 : f32 to vector<1x128xf32>
    %111 = arith.mulf %104, %110 : vector<1x128xf32>
    %112 = arith.addf %83, %111 : vector<1x128xf32>
    %c9 = arith.constant 9 : index
    %113 = memref.load %arg2[%c9] : memref<98xf32, #tpu.memory_space<smem>>
    %114 = vector.broadcast %113 : f32 to vector<16x128xf32>
    %115 = arith.mulf %0, %114 : vector<16x128xf32>
    %c10 = arith.constant 10 : index
    %116 = memref.load %arg2[%c10] : memref<98xf32, #tpu.memory_space<smem>>
    %117 = vector.broadcast %116 : f32 to vector<16x128xf32>
    %118 = arith.mulf %1, %117 : vector<16x128xf32>
    %119 = arith.addf %115, %118 : vector<16x128xf32>
    %c11 = arith.constant 11 : index
    %120 = memref.load %arg2[%c11] : memref<98xf32, #tpu.memory_space<smem>>
    %121 = vector.broadcast %120 : f32 to vector<16x128xf32>
    %122 = arith.mulf %2, %121 : vector<16x128xf32>
    %123 = arith.addf %119, %122 : vector<16x128xf32>
    %c51 = arith.constant 51 : index
    %124 = memref.load %arg2[%c51] : memref<98xf32, #tpu.memory_space<smem>>
    %125 = vector.broadcast %124 : f32 to vector<16x128xf32>
    %126 = arith.addf %123, %125 : vector<16x128xf32>
    %cst_17 = arith.constant 0.000000e+00 : f32
    %127 = vector.broadcast %cst_17 : f32 to vector<16x128xf32>
    %128 = arith.maximumf %126, %127 : vector<16x128xf32>
    %c15_i32_18 = arith.constant 15 : i32
    %129 = tpu.dynamic_rotate %128 by %c15_i32_18 dim 0 : vector<16x128xf32>, i32 -> vector<16x128xf32>
    %130 = arith.maximumf %128, %129 : vector<16x128xf32>
    %131 = arith.mulf %130, %27 : vector<16x128xf32>
    %cst_19 = arith.constant dense<0.000000e+00> : vector<128xf32>
    %132 = vector.multi_reduction <add>, %131, %cst_19 [0] : vector<16x128xf32> to vector<128xf32>
    %133 = vector.shape_cast %132 : vector<128xf32> to vector<1x128xf32>
    %c67 = arith.constant 67 : index
    %134 = memref.load %arg2[%c67] : memref<98xf32, #tpu.memory_space<smem>>
    %135 = vector.broadcast %134 : f32 to vector<1x128xf32>
    %136 = arith.mulf %133, %135 : vector<1x128xf32>
    %137 = arith.addf %108, %136 : vector<1x128xf32>
    %c83 = arith.constant 83 : index
    %138 = memref.load %arg2[%c83] : memref<98xf32, #tpu.memory_space<smem>>
    %139 = vector.broadcast %138 : f32 to vector<1x128xf32>
    %140 = arith.mulf %133, %139 : vector<1x128xf32>
    %141 = arith.addf %112, %140 : vector<1x128xf32>
    %c12 = arith.constant 12 : index
    %142 = memref.load %arg2[%c12] : memref<98xf32, #tpu.memory_space<smem>>
    %143 = vector.broadcast %142 : f32 to vector<16x128xf32>
    %144 = arith.mulf %0, %143 : vector<16x128xf32>
    %c13 = arith.constant 13 : index
    %145 = memref.load %arg2[%c13] : memref<98xf32, #tpu.memory_space<smem>>
    %146 = vector.broadcast %145 : f32 to vector<16x128xf32>
    %147 = arith.mulf %1, %146 : vector<16x128xf32>
    %148 = arith.addf %144, %147 : vector<16x128xf32>
    %c14 = arith.constant 14 : index
    %149 = memref.load %arg2[%c14] : memref<98xf32, #tpu.memory_space<smem>>
    %150 = vector.broadcast %149 : f32 to vector<16x128xf32>
    %151 = arith.mulf %2, %150 : vector<16x128xf32>
    %152 = arith.addf %148, %151 : vector<16x128xf32>
    %c52 = arith.constant 52 : index
    %153 = memref.load %arg2[%c52] : memref<98xf32, #tpu.memory_space<smem>>
    %154 = vector.broadcast %153 : f32 to vector<16x128xf32>
    %155 = arith.addf %152, %154 : vector<16x128xf32>
    %cst_20 = arith.constant 0.000000e+00 : f32
    %156 = vector.broadcast %cst_20 : f32 to vector<16x128xf32>
    %157 = arith.maximumf %155, %156 : vector<16x128xf32>
    %c15_i32_21 = arith.constant 15 : i32
    %158 = tpu.dynamic_rotate %157 by %c15_i32_21 dim 0 : vector<16x128xf32>, i32 -> vector<16x128xf32>
    %159 = arith.maximumf %157, %158 : vector<16x128xf32>
    %160 = arith.mulf %159, %27 : vector<16x128xf32>
    %cst_22 = arith.constant dense<0.000000e+00> : vector<128xf32>
    %161 = vector.multi_reduction <add>, %160, %cst_22 [0] : vector<16x128xf32> to vector<128xf32>
    %162 = vector.shape_cast %161 : vector<128xf32> to vector<1x128xf32>
    %c68 = arith.constant 68 : index
    %163 = memref.load %arg2[%c68] : memref<98xf32, #tpu.memory_space<smem>>
    %164 = vector.broadcast %163 : f32 to vector<1x128xf32>
    %165 = arith.mulf %162, %164 : vector<1x128xf32>
    %166 = arith.addf %137, %165 : vector<1x128xf32>
    %c84 = arith.constant 84 : index
    %167 = memref.load %arg2[%c84] : memref<98xf32, #tpu.memory_space<smem>>
    %168 = vector.broadcast %167 : f32 to vector<1x128xf32>
    %169 = arith.mulf %162, %168 : vector<1x128xf32>
    %170 = arith.addf %141, %169 : vector<1x128xf32>
    %c15 = arith.constant 15 : index
    %171 = memref.load %arg2[%c15] : memref<98xf32, #tpu.memory_space<smem>>
    %172 = vector.broadcast %171 : f32 to vector<16x128xf32>
    %173 = arith.mulf %0, %172 : vector<16x128xf32>
    %c16 = arith.constant 16 : index
    %174 = memref.load %arg2[%c16] : memref<98xf32, #tpu.memory_space<smem>>
    %175 = vector.broadcast %174 : f32 to vector<16x128xf32>
    %176 = arith.mulf %1, %175 : vector<16x128xf32>
    %177 = arith.addf %173, %176 : vector<16x128xf32>
    %c17 = arith.constant 17 : index
    %178 = memref.load %arg2[%c17] : memref<98xf32, #tpu.memory_space<smem>>
    %179 = vector.broadcast %178 : f32 to vector<16x128xf32>
    %180 = arith.mulf %2, %179 : vector<16x128xf32>
    %181 = arith.addf %177, %180 : vector<16x128xf32>
    %c53 = arith.constant 53 : index
    %182 = memref.load %arg2[%c53] : memref<98xf32, #tpu.memory_space<smem>>
    %183 = vector.broadcast %182 : f32 to vector<16x128xf32>
    %184 = arith.addf %181, %183 : vector<16x128xf32>
    %cst_23 = arith.constant 0.000000e+00 : f32
    %185 = vector.broadcast %cst_23 : f32 to vector<16x128xf32>
    %186 = arith.maximumf %184, %185 : vector<16x128xf32>
    %c15_i32_24 = arith.constant 15 : i32
    %187 = tpu.dynamic_rotate %186 by %c15_i32_24 dim 0 : vector<16x128xf32>, i32 -> vector<16x128xf32>
    %188 = arith.maximumf %186, %187 : vector<16x128xf32>
    %189 = arith.mulf %188, %27 : vector<16x128xf32>
    %cst_25 = arith.constant dense<0.000000e+00> : vector<128xf32>
    %190 = vector.multi_reduction <add>, %189, %cst_25 [0] : vector<16x128xf32> to vector<128xf32>
    %191 = vector.shape_cast %190 : vector<128xf32> to vector<1x128xf32>
    %c69 = arith.constant 69 : index
    %192 = memref.load %arg2[%c69] : memref<98xf32, #tpu.memory_space<smem>>
    %193 = vector.broadcast %192 : f32 to vector<1x128xf32>
    %194 = arith.mulf %191, %193 : vector<1x128xf32>
    %195 = arith.addf %166, %194 : vector<1x128xf32>
    %c85 = arith.constant 85 : index
    %196 = memref.load %arg2[%c85] : memref<98xf32, #tpu.memory_space<smem>>
    %197 = vector.broadcast %196 : f32 to vector<1x128xf32>
    %198 = arith.mulf %191, %197 : vector<1x128xf32>
    %199 = arith.addf %170, %198 : vector<1x128xf32>
    %c18 = arith.constant 18 : index
    %200 = memref.load %arg2[%c18] : memref<98xf32, #tpu.memory_space<smem>>
    %201 = vector.broadcast %200 : f32 to vector<16x128xf32>
    %202 = arith.mulf %0, %201 : vector<16x128xf32>
    %c19 = arith.constant 19 : index
    %203 = memref.load %arg2[%c19] : memref<98xf32, #tpu.memory_space<smem>>
    %204 = vector.broadcast %203 : f32 to vector<16x128xf32>
    %205 = arith.mulf %1, %204 : vector<16x128xf32>
    %206 = arith.addf %202, %205 : vector<16x128xf32>
    %c20 = arith.constant 20 : index
    %207 = memref.load %arg2[%c20] : memref<98xf32, #tpu.memory_space<smem>>
    %208 = vector.broadcast %207 : f32 to vector<16x128xf32>
    %209 = arith.mulf %2, %208 : vector<16x128xf32>
    %210 = arith.addf %206, %209 : vector<16x128xf32>
    %c54 = arith.constant 54 : index
    %211 = memref.load %arg2[%c54] : memref<98xf32, #tpu.memory_space<smem>>
    %212 = vector.broadcast %211 : f32 to vector<16x128xf32>
    %213 = arith.addf %210, %212 : vector<16x128xf32>
    %cst_26 = arith.constant 0.000000e+00 : f32
    %214 = vector.broadcast %cst_26 : f32 to vector<16x128xf32>
    %215 = arith.maximumf %213, %214 : vector<16x128xf32>
    %c15_i32_27 = arith.constant 15 : i32
    %216 = tpu.dynamic_rotate %215 by %c15_i32_27 dim 0 : vector<16x128xf32>, i32 -> vector<16x128xf32>
    %217 = arith.maximumf %215, %216 : vector<16x128xf32>
    %218 = arith.mulf %217, %27 : vector<16x128xf32>
    %cst_28 = arith.constant dense<0.000000e+00> : vector<128xf32>
    %219 = vector.multi_reduction <add>, %218, %cst_28 [0] : vector<16x128xf32> to vector<128xf32>
    %220 = vector.shape_cast %219 : vector<128xf32> to vector<1x128xf32>
    %c70 = arith.constant 70 : index
    %221 = memref.load %arg2[%c70] : memref<98xf32, #tpu.memory_space<smem>>
    %222 = vector.broadcast %221 : f32 to vector<1x128xf32>
    %223 = arith.mulf %220, %222 : vector<1x128xf32>
    %224 = arith.addf %195, %223 : vector<1x128xf32>
    %c86 = arith.constant 86 : index
    %225 = memref.load %arg2[%c86] : memref<98xf32, #tpu.memory_space<smem>>
    %226 = vector.broadcast %225 : f32 to vector<1x128xf32>
    %227 = arith.mulf %220, %226 : vector<1x128xf32>
    %228 = arith.addf %199, %227 : vector<1x128xf32>
    %c21 = arith.constant 21 : index
    %229 = memref.load %arg2[%c21] : memref<98xf32, #tpu.memory_space<smem>>
    %230 = vector.broadcast %229 : f32 to vector<16x128xf32>
    %231 = arith.mulf %0, %230 : vector<16x128xf32>
    %c22 = arith.constant 22 : index
    %232 = memref.load %arg2[%c22] : memref<98xf32, #tpu.memory_space<smem>>
    %233 = vector.broadcast %232 : f32 to vector<16x128xf32>
    %234 = arith.mulf %1, %233 : vector<16x128xf32>
    %235 = arith.addf %231, %234 : vector<16x128xf32>
    %c23 = arith.constant 23 : index
    %236 = memref.load %arg2[%c23] : memref<98xf32, #tpu.memory_space<smem>>
    %237 = vector.broadcast %236 : f32 to vector<16x128xf32>
    %238 = arith.mulf %2, %237 : vector<16x128xf32>
    %239 = arith.addf %235, %238 : vector<16x128xf32>
    %c55 = arith.constant 55 : index
    %240 = memref.load %arg2[%c55] : memref<98xf32, #tpu.memory_space<smem>>
    %241 = vector.broadcast %240 : f32 to vector<16x128xf32>
    %242 = arith.addf %239, %241 : vector<16x128xf32>
    %cst_29 = arith.constant 0.000000e+00 : f32
    %243 = vector.broadcast %cst_29 : f32 to vector<16x128xf32>
    %244 = arith.maximumf %242, %243 : vector<16x128xf32>
    %c15_i32_30 = arith.constant 15 : i32
    %245 = tpu.dynamic_rotate %244 by %c15_i32_30 dim 0 : vector<16x128xf32>, i32 -> vector<16x128xf32>
    %246 = arith.maximumf %244, %245 : vector<16x128xf32>
    %247 = arith.mulf %246, %27 : vector<16x128xf32>
    %cst_31 = arith.constant dense<0.000000e+00> : vector<128xf32>
    %248 = vector.multi_reduction <add>, %247, %cst_31 [0] : vector<16x128xf32> to vector<128xf32>
    %249 = vector.shape_cast %248 : vector<128xf32> to vector<1x128xf32>
    %c71 = arith.constant 71 : index
    %250 = memref.load %arg2[%c71] : memref<98xf32, #tpu.memory_space<smem>>
    %251 = vector.broadcast %250 : f32 to vector<1x128xf32>
    %252 = arith.mulf %249, %251 : vector<1x128xf32>
    %253 = arith.addf %224, %252 : vector<1x128xf32>
    %c87 = arith.constant 87 : index
    %254 = memref.load %arg2[%c87] : memref<98xf32, #tpu.memory_space<smem>>
    %255 = vector.broadcast %254 : f32 to vector<1x128xf32>
    %256 = arith.mulf %249, %255 : vector<1x128xf32>
    %257 = arith.addf %228, %256 : vector<1x128xf32>
    %c24 = arith.constant 24 : index
    %258 = memref.load %arg2[%c24] : memref<98xf32, #tpu.memory_space<smem>>
    %259 = vector.broadcast %258 : f32 to vector<16x128xf32>
    %260 = arith.mulf %0, %259 : vector<16x128xf32>
    %c25 = arith.constant 25 : index
    %261 = memref.load %arg2[%c25] : memref<98xf32, #tpu.memory_space<smem>>
    %262 = vector.broadcast %261 : f32 to vector<16x128xf32>
    %263 = arith.mulf %1, %262 : vector<16x128xf32>
    %264 = arith.addf %260, %263 : vector<16x128xf32>
    %c26 = arith.constant 26 : index
    %265 = memref.load %arg2[%c26] : memref<98xf32, #tpu.memory_space<smem>>
    %266 = vector.broadcast %265 : f32 to vector<16x128xf32>
    %267 = arith.mulf %2, %266 : vector<16x128xf32>
    %268 = arith.addf %264, %267 : vector<16x128xf32>
    %c56 = arith.constant 56 : index
    %269 = memref.load %arg2[%c56] : memref<98xf32, #tpu.memory_space<smem>>
    %270 = vector.broadcast %269 : f32 to vector<16x128xf32>
    %271 = arith.addf %268, %270 : vector<16x128xf32>
    %cst_32 = arith.constant 0.000000e+00 : f32
    %272 = vector.broadcast %cst_32 : f32 to vector<16x128xf32>
    %273 = arith.maximumf %271, %272 : vector<16x128xf32>
    %c15_i32_33 = arith.constant 15 : i32
    %274 = tpu.dynamic_rotate %273 by %c15_i32_33 dim 0 : vector<16x128xf32>, i32 -> vector<16x128xf32>
    %275 = arith.maximumf %273, %274 : vector<16x128xf32>
    %276 = arith.mulf %275, %27 : vector<16x128xf32>
    %cst_34 = arith.constant dense<0.000000e+00> : vector<128xf32>
    %277 = vector.multi_reduction <add>, %276, %cst_34 [0] : vector<16x128xf32> to vector<128xf32>
    %278 = vector.shape_cast %277 : vector<128xf32> to vector<1x128xf32>
    %c72 = arith.constant 72 : index
    %279 = memref.load %arg2[%c72] : memref<98xf32, #tpu.memory_space<smem>>
    %280 = vector.broadcast %279 : f32 to vector<1x128xf32>
    %281 = arith.mulf %278, %280 : vector<1x128xf32>
    %282 = arith.addf %253, %281 : vector<1x128xf32>
    %c88 = arith.constant 88 : index
    %283 = memref.load %arg2[%c88] : memref<98xf32, #tpu.memory_space<smem>>
    %284 = vector.broadcast %283 : f32 to vector<1x128xf32>
    %285 = arith.mulf %278, %284 : vector<1x128xf32>
    %286 = arith.addf %257, %285 : vector<1x128xf32>
    %c27 = arith.constant 27 : index
    %287 = memref.load %arg2[%c27] : memref<98xf32, #tpu.memory_space<smem>>
    %288 = vector.broadcast %287 : f32 to vector<16x128xf32>
    %289 = arith.mulf %0, %288 : vector<16x128xf32>
    %c28 = arith.constant 28 : index
    %290 = memref.load %arg2[%c28] : memref<98xf32, #tpu.memory_space<smem>>
    %291 = vector.broadcast %290 : f32 to vector<16x128xf32>
    %292 = arith.mulf %1, %291 : vector<16x128xf32>
    %293 = arith.addf %289, %292 : vector<16x128xf32>
    %c29 = arith.constant 29 : index
    %294 = memref.load %arg2[%c29] : memref<98xf32, #tpu.memory_space<smem>>
    %295 = vector.broadcast %294 : f32 to vector<16x128xf32>
    %296 = arith.mulf %2, %295 : vector<16x128xf32>
    %297 = arith.addf %293, %296 : vector<16x128xf32>
    %c57 = arith.constant 57 : index
    %298 = memref.load %arg2[%c57] : memref<98xf32, #tpu.memory_space<smem>>
    %299 = vector.broadcast %298 : f32 to vector<16x128xf32>
    %300 = arith.addf %297, %299 : vector<16x128xf32>
    %cst_35 = arith.constant 0.000000e+00 : f32
    %301 = vector.broadcast %cst_35 : f32 to vector<16x128xf32>
    %302 = arith.maximumf %300, %301 : vector<16x128xf32>
    %c15_i32_36 = arith.constant 15 : i32
    %303 = tpu.dynamic_rotate %302 by %c15_i32_36 dim 0 : vector<16x128xf32>, i32 -> vector<16x128xf32>
    %304 = arith.maximumf %302, %303 : vector<16x128xf32>
    %305 = arith.mulf %304, %27 : vector<16x128xf32>
    %cst_37 = arith.constant dense<0.000000e+00> : vector<128xf32>
    %306 = vector.multi_reduction <add>, %305, %cst_37 [0] : vector<16x128xf32> to vector<128xf32>
    %307 = vector.shape_cast %306 : vector<128xf32> to vector<1x128xf32>
    %c73 = arith.constant 73 : index
    %308 = memref.load %arg2[%c73] : memref<98xf32, #tpu.memory_space<smem>>
    %309 = vector.broadcast %308 : f32 to vector<1x128xf32>
    %310 = arith.mulf %307, %309 : vector<1x128xf32>
    %311 = arith.addf %282, %310 : vector<1x128xf32>
    %c89 = arith.constant 89 : index
    %312 = memref.load %arg2[%c89] : memref<98xf32, #tpu.memory_space<smem>>
    %313 = vector.broadcast %312 : f32 to vector<1x128xf32>
    %314 = arith.mulf %307, %313 : vector<1x128xf32>
    %315 = arith.addf %286, %314 : vector<1x128xf32>
    %c30 = arith.constant 30 : index
    %316 = memref.load %arg2[%c30] : memref<98xf32, #tpu.memory_space<smem>>
    %317 = vector.broadcast %316 : f32 to vector<16x128xf32>
    %318 = arith.mulf %0, %317 : vector<16x128xf32>
    %c31 = arith.constant 31 : index
    %319 = memref.load %arg2[%c31] : memref<98xf32, #tpu.memory_space<smem>>
    %320 = vector.broadcast %319 : f32 to vector<16x128xf32>
    %321 = arith.mulf %1, %320 : vector<16x128xf32>
    %322 = arith.addf %318, %321 : vector<16x128xf32>
    %c32 = arith.constant 32 : index
    %323 = memref.load %arg2[%c32] : memref<98xf32, #tpu.memory_space<smem>>
    %324 = vector.broadcast %323 : f32 to vector<16x128xf32>
    %325 = arith.mulf %2, %324 : vector<16x128xf32>
    %326 = arith.addf %322, %325 : vector<16x128xf32>
    %c58 = arith.constant 58 : index
    %327 = memref.load %arg2[%c58] : memref<98xf32, #tpu.memory_space<smem>>
    %328 = vector.broadcast %327 : f32 to vector<16x128xf32>
    %329 = arith.addf %326, %328 : vector<16x128xf32>
    %cst_38 = arith.constant 0.000000e+00 : f32
    %330 = vector.broadcast %cst_38 : f32 to vector<16x128xf32>
    %331 = arith.maximumf %329, %330 : vector<16x128xf32>
    %c15_i32_39 = arith.constant 15 : i32
    %332 = tpu.dynamic_rotate %331 by %c15_i32_39 dim 0 : vector<16x128xf32>, i32 -> vector<16x128xf32>
    %333 = arith.maximumf %331, %332 : vector<16x128xf32>
    %334 = arith.mulf %333, %27 : vector<16x128xf32>
    %cst_40 = arith.constant dense<0.000000e+00> : vector<128xf32>
    %335 = vector.multi_reduction <add>, %334, %cst_40 [0] : vector<16x128xf32> to vector<128xf32>
    %336 = vector.shape_cast %335 : vector<128xf32> to vector<1x128xf32>
    %c74 = arith.constant 74 : index
    %337 = memref.load %arg2[%c74] : memref<98xf32, #tpu.memory_space<smem>>
    %338 = vector.broadcast %337 : f32 to vector<1x128xf32>
    %339 = arith.mulf %336, %338 : vector<1x128xf32>
    %340 = arith.addf %311, %339 : vector<1x128xf32>
    %c90 = arith.constant 90 : index
    %341 = memref.load %arg2[%c90] : memref<98xf32, #tpu.memory_space<smem>>
    %342 = vector.broadcast %341 : f32 to vector<1x128xf32>
    %343 = arith.mulf %336, %342 : vector<1x128xf32>
    %344 = arith.addf %315, %343 : vector<1x128xf32>
    %c33 = arith.constant 33 : index
    %345 = memref.load %arg2[%c33] : memref<98xf32, #tpu.memory_space<smem>>
    %346 = vector.broadcast %345 : f32 to vector<16x128xf32>
    %347 = arith.mulf %0, %346 : vector<16x128xf32>
    %c34 = arith.constant 34 : index
    %348 = memref.load %arg2[%c34] : memref<98xf32, #tpu.memory_space<smem>>
    %349 = vector.broadcast %348 : f32 to vector<16x128xf32>
    %350 = arith.mulf %1, %349 : vector<16x128xf32>
    %351 = arith.addf %347, %350 : vector<16x128xf32>
    %c35 = arith.constant 35 : index
    %352 = memref.load %arg2[%c35] : memref<98xf32, #tpu.memory_space<smem>>
    %353 = vector.broadcast %352 : f32 to vector<16x128xf32>
    %354 = arith.mulf %2, %353 : vector<16x128xf32>
    %355 = arith.addf %351, %354 : vector<16x128xf32>
    %c59 = arith.constant 59 : index
    %356 = memref.load %arg2[%c59] : memref<98xf32, #tpu.memory_space<smem>>
    %357 = vector.broadcast %356 : f32 to vector<16x128xf32>
    %358 = arith.addf %355, %357 : vector<16x128xf32>
    %cst_41 = arith.constant 0.000000e+00 : f32
    %359 = vector.broadcast %cst_41 : f32 to vector<16x128xf32>
    %360 = arith.maximumf %358, %359 : vector<16x128xf32>
    %c15_i32_42 = arith.constant 15 : i32
    %361 = tpu.dynamic_rotate %360 by %c15_i32_42 dim 0 : vector<16x128xf32>, i32 -> vector<16x128xf32>
    %362 = arith.maximumf %360, %361 : vector<16x128xf32>
    %363 = arith.mulf %362, %27 : vector<16x128xf32>
    %cst_43 = arith.constant dense<0.000000e+00> : vector<128xf32>
    %364 = vector.multi_reduction <add>, %363, %cst_43 [0] : vector<16x128xf32> to vector<128xf32>
    %365 = vector.shape_cast %364 : vector<128xf32> to vector<1x128xf32>
    %c75 = arith.constant 75 : index
    %366 = memref.load %arg2[%c75] : memref<98xf32, #tpu.memory_space<smem>>
    %367 = vector.broadcast %366 : f32 to vector<1x128xf32>
    %368 = arith.mulf %365, %367 : vector<1x128xf32>
    %369 = arith.addf %340, %368 : vector<1x128xf32>
    %c91 = arith.constant 91 : index
    %370 = memref.load %arg2[%c91] : memref<98xf32, #tpu.memory_space<smem>>
    %371 = vector.broadcast %370 : f32 to vector<1x128xf32>
    %372 = arith.mulf %365, %371 : vector<1x128xf32>
    %373 = arith.addf %344, %372 : vector<1x128xf32>
    %c36 = arith.constant 36 : index
    %374 = memref.load %arg2[%c36] : memref<98xf32, #tpu.memory_space<smem>>
    %375 = vector.broadcast %374 : f32 to vector<16x128xf32>
    %376 = arith.mulf %0, %375 : vector<16x128xf32>
    %c37 = arith.constant 37 : index
    %377 = memref.load %arg2[%c37] : memref<98xf32, #tpu.memory_space<smem>>
    %378 = vector.broadcast %377 : f32 to vector<16x128xf32>
    %379 = arith.mulf %1, %378 : vector<16x128xf32>
    %380 = arith.addf %376, %379 : vector<16x128xf32>
    %c38 = arith.constant 38 : index
    %381 = memref.load %arg2[%c38] : memref<98xf32, #tpu.memory_space<smem>>
    %382 = vector.broadcast %381 : f32 to vector<16x128xf32>
    %383 = arith.mulf %2, %382 : vector<16x128xf32>
    %384 = arith.addf %380, %383 : vector<16x128xf32>
    %c60 = arith.constant 60 : index
    %385 = memref.load %arg2[%c60] : memref<98xf32, #tpu.memory_space<smem>>
    %386 = vector.broadcast %385 : f32 to vector<16x128xf32>
    %387 = arith.addf %384, %386 : vector<16x128xf32>
    %cst_44 = arith.constant 0.000000e+00 : f32
    %388 = vector.broadcast %cst_44 : f32 to vector<16x128xf32>
    %389 = arith.maximumf %387, %388 : vector<16x128xf32>
    %c15_i32_45 = arith.constant 15 : i32
    %390 = tpu.dynamic_rotate %389 by %c15_i32_45 dim 0 : vector<16x128xf32>, i32 -> vector<16x128xf32>
    %391 = arith.maximumf %389, %390 : vector<16x128xf32>
    %392 = arith.mulf %391, %27 : vector<16x128xf32>
    %cst_46 = arith.constant dense<0.000000e+00> : vector<128xf32>
    %393 = vector.multi_reduction <add>, %392, %cst_46 [0] : vector<16x128xf32> to vector<128xf32>
    %394 = vector.shape_cast %393 : vector<128xf32> to vector<1x128xf32>
    %c76 = arith.constant 76 : index
    %395 = memref.load %arg2[%c76] : memref<98xf32, #tpu.memory_space<smem>>
    %396 = vector.broadcast %395 : f32 to vector<1x128xf32>
    %397 = arith.mulf %394, %396 : vector<1x128xf32>
    %398 = arith.addf %369, %397 : vector<1x128xf32>
    %c92 = arith.constant 92 : index
    %399 = memref.load %arg2[%c92] : memref<98xf32, #tpu.memory_space<smem>>
    %400 = vector.broadcast %399 : f32 to vector<1x128xf32>
    %401 = arith.mulf %394, %400 : vector<1x128xf32>
    %402 = arith.addf %373, %401 : vector<1x128xf32>
    %c39 = arith.constant 39 : index
    %403 = memref.load %arg2[%c39] : memref<98xf32, #tpu.memory_space<smem>>
    %404 = vector.broadcast %403 : f32 to vector<16x128xf32>
    %405 = arith.mulf %0, %404 : vector<16x128xf32>
    %c40 = arith.constant 40 : index
    %406 = memref.load %arg2[%c40] : memref<98xf32, #tpu.memory_space<smem>>
    %407 = vector.broadcast %406 : f32 to vector<16x128xf32>
    %408 = arith.mulf %1, %407 : vector<16x128xf32>
    %409 = arith.addf %405, %408 : vector<16x128xf32>
    %c41 = arith.constant 41 : index
    %410 = memref.load %arg2[%c41] : memref<98xf32, #tpu.memory_space<smem>>
    %411 = vector.broadcast %410 : f32 to vector<16x128xf32>
    %412 = arith.mulf %2, %411 : vector<16x128xf32>
    %413 = arith.addf %409, %412 : vector<16x128xf32>
    %c61 = arith.constant 61 : index
    %414 = memref.load %arg2[%c61] : memref<98xf32, #tpu.memory_space<smem>>
    %415 = vector.broadcast %414 : f32 to vector<16x128xf32>
    %416 = arith.addf %413, %415 : vector<16x128xf32>
    %cst_47 = arith.constant 0.000000e+00 : f32
    %417 = vector.broadcast %cst_47 : f32 to vector<16x128xf32>
    %418 = arith.maximumf %416, %417 : vector<16x128xf32>
    %c15_i32_48 = arith.constant 15 : i32
    %419 = tpu.dynamic_rotate %418 by %c15_i32_48 dim 0 : vector<16x128xf32>, i32 -> vector<16x128xf32>
    %420 = arith.maximumf %418, %419 : vector<16x128xf32>
    %421 = arith.mulf %420, %27 : vector<16x128xf32>
    %cst_49 = arith.constant dense<0.000000e+00> : vector<128xf32>
    %422 = vector.multi_reduction <add>, %421, %cst_49 [0] : vector<16x128xf32> to vector<128xf32>
    %423 = vector.shape_cast %422 : vector<128xf32> to vector<1x128xf32>
    %c77 = arith.constant 77 : index
    %424 = memref.load %arg2[%c77] : memref<98xf32, #tpu.memory_space<smem>>
    %425 = vector.broadcast %424 : f32 to vector<1x128xf32>
    %426 = arith.mulf %423, %425 : vector<1x128xf32>
    %427 = arith.addf %398, %426 : vector<1x128xf32>
    %c93 = arith.constant 93 : index
    %428 = memref.load %arg2[%c93] : memref<98xf32, #tpu.memory_space<smem>>
    %429 = vector.broadcast %428 : f32 to vector<1x128xf32>
    %430 = arith.mulf %423, %429 : vector<1x128xf32>
    %431 = arith.addf %402, %430 : vector<1x128xf32>
    %c42 = arith.constant 42 : index
    %432 = memref.load %arg2[%c42] : memref<98xf32, #tpu.memory_space<smem>>
    %433 = vector.broadcast %432 : f32 to vector<16x128xf32>
    %434 = arith.mulf %0, %433 : vector<16x128xf32>
    %c43 = arith.constant 43 : index
    %435 = memref.load %arg2[%c43] : memref<98xf32, #tpu.memory_space<smem>>
    %436 = vector.broadcast %435 : f32 to vector<16x128xf32>
    %437 = arith.mulf %1, %436 : vector<16x128xf32>
    %438 = arith.addf %434, %437 : vector<16x128xf32>
    %c44 = arith.constant 44 : index
    %439 = memref.load %arg2[%c44] : memref<98xf32, #tpu.memory_space<smem>>
    %440 = vector.broadcast %439 : f32 to vector<16x128xf32>
    %441 = arith.mulf %2, %440 : vector<16x128xf32>
    %442 = arith.addf %438, %441 : vector<16x128xf32>
    %c62 = arith.constant 62 : index
    %443 = memref.load %arg2[%c62] : memref<98xf32, #tpu.memory_space<smem>>
    %444 = vector.broadcast %443 : f32 to vector<16x128xf32>
    %445 = arith.addf %442, %444 : vector<16x128xf32>
    %cst_50 = arith.constant 0.000000e+00 : f32
    %446 = vector.broadcast %cst_50 : f32 to vector<16x128xf32>
    %447 = arith.maximumf %445, %446 : vector<16x128xf32>
    %c15_i32_51 = arith.constant 15 : i32
    %448 = tpu.dynamic_rotate %447 by %c15_i32_51 dim 0 : vector<16x128xf32>, i32 -> vector<16x128xf32>
    %449 = arith.maximumf %447, %448 : vector<16x128xf32>
    %450 = arith.mulf %449, %27 : vector<16x128xf32>
    %cst_52 = arith.constant dense<0.000000e+00> : vector<128xf32>
    %451 = vector.multi_reduction <add>, %450, %cst_52 [0] : vector<16x128xf32> to vector<128xf32>
    %452 = vector.shape_cast %451 : vector<128xf32> to vector<1x128xf32>
    %c78 = arith.constant 78 : index
    %453 = memref.load %arg2[%c78] : memref<98xf32, #tpu.memory_space<smem>>
    %454 = vector.broadcast %453 : f32 to vector<1x128xf32>
    %455 = arith.mulf %452, %454 : vector<1x128xf32>
    %456 = arith.addf %427, %455 : vector<1x128xf32>
    %c94 = arith.constant 94 : index
    %457 = memref.load %arg2[%c94] : memref<98xf32, #tpu.memory_space<smem>>
    %458 = vector.broadcast %457 : f32 to vector<1x128xf32>
    %459 = arith.mulf %452, %458 : vector<1x128xf32>
    %460 = arith.addf %431, %459 : vector<1x128xf32>
    %c45 = arith.constant 45 : index
    %461 = memref.load %arg2[%c45] : memref<98xf32, #tpu.memory_space<smem>>
    %462 = vector.broadcast %461 : f32 to vector<16x128xf32>
    %463 = arith.mulf %0, %462 : vector<16x128xf32>
    %c46 = arith.constant 46 : index
    %464 = memref.load %arg2[%c46] : memref<98xf32, #tpu.memory_space<smem>>
    %465 = vector.broadcast %464 : f32 to vector<16x128xf32>
    %466 = arith.mulf %1, %465 : vector<16x128xf32>
    %467 = arith.addf %463, %466 : vector<16x128xf32>
    %c47 = arith.constant 47 : index
    %468 = memref.load %arg2[%c47] : memref<98xf32, #tpu.memory_space<smem>>
    %469 = vector.broadcast %468 : f32 to vector<16x128xf32>
    %470 = arith.mulf %2, %469 : vector<16x128xf32>
    %471 = arith.addf %467, %470 : vector<16x128xf32>
    %c63 = arith.constant 63 : index
    %472 = memref.load %arg2[%c63] : memref<98xf32, #tpu.memory_space<smem>>
    %473 = vector.broadcast %472 : f32 to vector<16x128xf32>
    %474 = arith.addf %471, %473 : vector<16x128xf32>
    %cst_53 = arith.constant 0.000000e+00 : f32
    %475 = vector.broadcast %cst_53 : f32 to vector<16x128xf32>
    %476 = arith.maximumf %474, %475 : vector<16x128xf32>
    %c15_i32_54 = arith.constant 15 : i32
    %477 = tpu.dynamic_rotate %476 by %c15_i32_54 dim 0 : vector<16x128xf32>, i32 -> vector<16x128xf32>
    %478 = arith.maximumf %476, %477 : vector<16x128xf32>
    %479 = arith.mulf %478, %27 : vector<16x128xf32>
    %cst_55 = arith.constant dense<0.000000e+00> : vector<128xf32>
    %480 = vector.multi_reduction <add>, %479, %cst_55 [0] : vector<16x128xf32> to vector<128xf32>
    %481 = vector.shape_cast %480 : vector<128xf32> to vector<1x128xf32>
    %c79 = arith.constant 79 : index
    %482 = memref.load %arg2[%c79] : memref<98xf32, #tpu.memory_space<smem>>
    %483 = vector.broadcast %482 : f32 to vector<1x128xf32>
    %484 = arith.mulf %481, %483 : vector<1x128xf32>
    %485 = arith.addf %456, %484 : vector<1x128xf32>
    %c95 = arith.constant 95 : index
    %486 = memref.load %arg2[%c95] : memref<98xf32, #tpu.memory_space<smem>>
    %487 = vector.broadcast %486 : f32 to vector<1x128xf32>
    %488 = arith.mulf %481, %487 : vector<1x128xf32>
    %489 = arith.addf %460, %488 : vector<1x128xf32>
    %c96 = arith.constant 96 : index
    %490 = memref.load %arg2[%c96] : memref<98xf32, #tpu.memory_space<smem>>
    %491 = vector.broadcast %490 : f32 to vector<1x128xf32>
    %492 = arith.addf %485, %491 : vector<1x128xf32>
    %c97 = arith.constant 97 : index
    %493 = memref.load %arg2[%c97] : memref<98xf32, #tpu.memory_space<smem>>
    %494 = vector.broadcast %493 : f32 to vector<1x128xf32>
    %495 = arith.addf %489, %494 : vector<1x128xf32>
    %496 = tpu.concatenate %492, %495 in 0 : vector<1x128xf32>, vector<1x128xf32> -> vector<2x128xf32>
    %c0_56 = arith.constant 0 : index
    %c0_57 = arith.constant 0 : index
    %497 = vector.load %arg3[%c0_56, %c0_57] : memref<2x128xf32, #tpu.memory_space<vmem>>, vector<2x128xf32>
    tpu.vector_store %arg3[%c0_56, %c0_57], %496 {strides = array<i32>} : memref<2x128xf32, #tpu.memory_space<vmem>>, vector<2x128xf32>,
    return
  }
  func.func @transform_0(%arg0: i32) -> (i32, i32) {
    %c0_i32 = arith.constant 0 : i32
    %c0_i32_0 = arith.constant 0 : i32
    return %c0_i32, %arg0 : i32, i32
  }
  func.func @transform_1(%arg0: i32) -> i32 {
    %c0_i32 = arith.constant 0 : i32
    %c0_i32_0 = arith.constant 0 : i32
    return %c0_i32 : i32
  }
  func.func @transform_2(%arg0: i32) -> (i32, i32) {
    %c0_i32 = arith.constant 0 : i32
    %c0_i32_0 = arith.constant 0 : i32
    return %c0_i32, %arg0 : i32, i32
  }
}

</mosaic_0001>

<llo_original>
// kernel: tpu_custom_call.1
$region0: #{tpu_custom_call.1}
  #allocation0 [shape = 'u32[]', space=smem, size = 0x4, offset = 0x4, fixed_abs, tag = 'smem constant byte address 0x4 - core index']
  #allocation1 [shape = 'u32[144,128]{1,0:T(1,128)}', space=vmem, size = 0x12000, scoped, tag = 'internal scratch']
  %s0 = inlined_call_operand.hbm [shape: f32[16,128], index: 0, kind: input, shape index: {}]
  %s1 = inlined_call_operand.vmem [shape: f32[98], index: 1, kind: input, shape index: {}]
  %s2 = inlined_call_operand.hbm [shape: f32[2,128], index: 2, kind: output, shape index: {}]
  %s3 = sld [smem:[#allocation0]]
  $region26: #{tpu_custom_call.1} parent=0
    _
  %s5 = ssub.s32 1, %s3
  %s6 = scalar_select 0, %s5, %s3
  $region1: #{tpu_custom_call.1} parent=0
    #allocation2 [shape = 'u8[8192]{0}', space=vmem, size = 0x2000, scoped, tag = 'input window, operand 0, single buffered']
    #allocation3 [shape = 's32[1]{0}', space=sflag, size = 0x4, scoped, tag = 'scoped memory for tpu_custom_call.1']
    #allocation4 [shape = 's32[1]{0}', space=sflag, size = 0x4, scoped, tag = 'scoped memory for tpu_custom_call.1']
    #allocation5 [shape = 's32[1]{0}', space=sflag, size = 0x4, scoped, tag = 'scoped memory for tpu_custom_call.1']
    #allocation6 [shape = 'u8[512]{0}', space=smem, size = 0x200, scoped, tag = 'input window, operand 1, single buffered']
    #allocation7 [shape = 'u8[1024]{0}', space=vmem, size = 0x400, scoped, tag = 'output window, operand 0, single buffered']
    %7 = vsyncpa [#allocation3], 0
    %8 = vsyncpa [#allocation5], 0
    %9 = vsyncpa [#allocation4], 0
    // Predicated region
    $region2: #{tpu_custom_call.1} parent=1 // pred_check
      _
    $region3: #{tpu_custom_call.1} parent=1 // pred_check_branch
      %11 = sbr.rel (0) target = $region5
    $region4: #{tpu_custom_call.1} parent=1 // pred_region
      %s13 = ssub.s32 256, 256
      %14 = vsyncadd [#allocation3], %s13
      %s15 = sshll.u32 [#allocation2], 4
      %s16 = int_to_ptr.vmem [resolvable:$true] %s15
      %21 = dma.hbm_to_vmem [thread:$0]  %s0, 256, %s16, [#allocation3], 128, 128, 8
    $region5: #{tpu_custom_call.1} parent=1 // pred_fallthru
      _
    // Predicated region
    $region6: #{tpu_custom_call.1} parent=1 // pred_check
      _
    $region7: #{tpu_custom_call.1} parent=1 // pred_check_branch
      %23 = sbr.rel (0) target = $region9
    $region8: #{tpu_custom_call.1} parent=1 // pred_region
      %s25 = ssub.s32 16, 16
      %26 = vsyncadd [#allocation5], %s25
      %s28 = sshll.u32 %s1, 4
      %s29 = int_to_ptr.vmem [resolvable:$true] %s28
      %31 = dma.vmem_to_smem %s29, 16, [#allocation6], [#allocation5]
    $region9: #{tpu_custom_call.1} parent=1 // pred_fallthru
      _
    // Predicated region
    $region10: #{tpu_custom_call.1} parent=1 // pred_check
      _
    $region11: #{tpu_custom_call.1} parent=1 // pred_check_branch
      %33 = sbr.rel (0) target = $region13
    $region12: #{tpu_custom_call.1} parent=1 // pred_region
      %34 = dma.done [#allocation3], 256
    $region13: #{tpu_custom_call.1} parent=1 // pred_fallthru
      _
    // Predicated region
    $region14: #{tpu_custom_call.1} parent=1 // pred_check
      _
    $region15: #{tpu_custom_call.1} parent=1 // pred_check_branch
      %36 = sbr.rel (0) target = $region17
    $region16: #{tpu_custom_call.1} parent=1 // pred_region
      %37 = dma.done [#allocation5], 16
    $region17: #{tpu_custom_call.1} parent=1 // pred_fallthru
      _
    %38 = sfence
    %v39 = vld [vmem:[#allocation2] sm:$0xff]
    %v40 = vld [vmem:[#allocation2 + $0x8] sm:$0xff]
    %v41 = vrot.slane %v39, 1
    %v42 = vrot.slane %v40, 1
    %v43 = vlaneseq
    %v44 = vshrl.u32 %v43, 7
    %vm45 = vcmp.lt.s32.totalorder %v44, 7
    %v46 = vsel %vm45, %v41, %v42
    %v47 = vsel %vm45, %v42, %v41
    %v48 = vrot.slane %v39, 2
    %v49 = vrot.slane %v40, 2
    %vm50 = vcmp.lt.s32.totalorder %v44, 6
    %v51 = vsel %vm50, %v48, %v49
    %v52 = vsel %vm50, %v49, %v48
    %v53 = vadd.s32 %v44, 8
    %vm54 = vcmp.lt.s32.totalorder %v44, 0
    %v55 = vsub.s32 0, %v44
    %v56 = vsel %vm54, %v55, %v44
    %v57 = vshrl.u32 %v56, 1
    %v58 = vand.u32 %v56, 1
    %v59 = vsub.s32 0, %v58
    %v60 = vsel %vm54, %v59, %v58
    %vm61 = vcmp.lt.s32.totalorder %v53, 0
    %v62 = vsub.s32 0, %v53
    %v63 = vsel %vm61, %v62, %v53
    %v64 = vshrl.u32 %v63, 1
    %v65 = vand.u32 %v63, 1
    %v66 = vsub.s32 0, %v65
    %v67 = vsel %vm61, %v66, %v65
    %vm68 = vcmp.ne.s32.totalorder %v60, 0
    %vm69 = vcmp.ne.s32.totalorder %v67, 0
    %vm70 = vcmp.lt.s32.totalorder %v60, 0
    %vm71 = vcmp.lt.s32.totalorder %v67, 0
    %vm72 = vmand %vm70, %vm68
    %vm73 = vmand %vm71, %vm69
    %v74 = vadd.s32 %v60, 2
    %v75 = vadd.s32 %v67, 2
    %v76 = vsel %vm72, %v74, %v60
    %v77 = vsel %vm73, %v75, %v67
    %vm78 = vcmp.eq.s32.totalorder %v76, 0
    %vm79 = vcmp.eq.s32.totalorder %v77, 0
    %vm80 = vcmp.lt.s32.totalorder %v44, 14
    %vm81 = vcmp.lt.s32.totalorder %v53, 14
    %vm82 = vmand %vm78, %vm80
    %vm83 = vmand %vm79, %vm81
    %v84 = vsel %vm82, 0.14285715, 0.0
    %v85 = vsel %vm83, 0.14285715, 0.0
    %s86 = sld [smem:[#allocation6]]
    %v87 = vstv %s86
    %v88 = vmul.f32 %v39, %v87
    %v89 = vmul.f32 %v40, %v87
    %s90 = sld [smem:[#allocation6 + $0x1]]
    %v91 = vstv %s90
    %v92 = vmul.f32 %v46, %v91
    %v93 = vmul.f32 %v47, %v91
    %v94 = vadd.f32 %v88, %v92
    %v95 = vadd.f32 %v89, %v93
    %s96 = sld [smem:[#allocation6 + $0x2]]
    %v97 = vstv %s96
    %v98 = vmul.f32 %v51, %v97
    %v99 = vmul.f32 %v52, %v97
    %v100 = vadd.f32 %v94, %v98
    %v101 = vadd.f32 %v95, %v99
    %s102 = sld [smem:[#allocation6 + $0x30]]
    %v103 = vstv %s102
    %v104 = vadd.f32 %v100, %v103
    %v105 = vadd.f32 %v101, %v103
    %v106 = vmax.f32 %v104, 0.0
    %v107 = vmax.f32 %v105, 0.0
    %v108 = vrot.slane %v106, 1
    %v109 = vrot.slane %v107, 1
    %v110 = vsel %vm45, %v108, %v109
    %v111 = vsel %vm45, %v109, %v108
    %v112 = vmax.f32 %v106, %v110
    %v113 = vmax.f32 %v107, %v111
    %v114 = vmul.f32 %v112, %v84
    %v115 = vmul.f32 %v113, %v85
    %v116 = vadd.f32 %v114, %v115
    %v117 = vrot.slane %v116, 4
    %v118 = vadd.f32 %v116, %v117
    %v119 = vrot.slane %v118, 2
    %v120 = vadd.f32 %v118, %v119
    %v121 = vrot.slane %v120, 1
    %v122 = vadd.f32 %v120, %v121
    %s123 = sld [smem:[#allocation6 + $0x40]]
    %v124 = vstv %s123
    %v125 = vmul.f32 %v122, %v124
    %s126 = sld [smem:[#allocation6 + $0x50]]
    %v127 = vstv %s126
    %v128 = vmul.f32 %v122, %v127
    %s129 = sld [smem:[#allocation6 + $0x3]]
    %v130 = vstv %s129
    %v131 = vmul.f32 %v39, %v130
    %v132 = vmul.f32 %v40, %v130
    %s133 = sld [smem:[#allocation6 + $0x4]]
    %v134 = vstv %s133
    %v135 = vmul.f32 %v46, %v134
    %v136 = vmul.f32 %v47, %v134
    %v137 = vadd.f32 %v131, %v135
    %v138 = vadd.f32 %v132, %v136
    %s139 = sld [smem:[#allocation6 + $0x5]]
    %v140 = vstv %s139
    %v141 = vmul.f32 %v51, %v140
    %v142 = vmul.f32 %v52, %v140
    %v143 = vadd.f32 %v137, %v141
    %v144 = vadd.f32 %v138, %v142
    %s145 = sld [smem:[#allocation6 + $0x31]]
    %v146 = vstv %s145
    %v147 = vadd.f32 %v143, %v146
    %v148 = vadd.f32 %v144, %v146
    %v149 = vmax.f32 %v147, 0.0
    %v150 = vmax.f32 %v148, 0.0
    %v151 = vrot.slane %v149, 1
    %v152 = vrot.slane %v150, 1
    %v153 = vsel %vm45, %v151, %v152
    %v154 = vsel %vm45, %v152, %v151
    %v155 = vmax.f32 %v149, %v153
    %v156 = vmax.f32 %v150, %v154
    %v157 = vmul.f32 %v155, %v84
    %v158 = vmul.f32 %v156, %v85
    %v159 = vadd.f32 %v157, %v158
    %v160 = vrot.slane %v159, 4
    %v161 = vadd.f32 %v159, %v160
    %v162 = vrot.slane %v161, 2
    %v163 = vadd.f32 %v161, %v162
    %v164 = vrot.slane %v163, 1
    %v165 = vadd.f32 %v163, %v164
    %s166 = sld [smem:[#allocation6 + $0x41]]
    %v167 = vstv %s166
    %v168 = vmul.f32 %v165, %v167
    %v169 = vadd.f32 %v125, %v168
    %s170 = sld [smem:[#allocation6 + $0x51]]
    %v171 = vstv %s170
    %v172 = vmul.f32 %v165, %v171
    %v173 = vadd.f32 %v128, %v172
    %s174 = sld [smem:[#allocation6 + $0x6]]
    %v175 = vstv %s174
    %v176 = vmul.f32 %v39, %v175
    %v177 = vmul.f32 %v40, %v175
    %s178 = sld [smem:[#allocation6 + $0x7]]
    %v179 = vstv %s178
    %v180 = vmul.f32 %v46, %v179
    %v181 = vmul.f32 %v47, %v179
    %v182 = vadd.f32 %v176, %v180
    %v183 = vadd.f32 %v177, %v181
    %s184 = sld [smem:[#allocation6 + $0x8]]
    %v185 = vstv %s184
    %v186 = vmul.f32 %v51, %v185
    %v187 = vmul.f32 %v52, %v185
    %v188 = vadd.f32 %v182, %v186
    %v189 = vadd.f32 %v183, %v187
    %s190 = sld [smem:[#allocation6 + $0x32]]
    %v191 = vstv %s190
    %v192 = vadd.f32 %v188, %v191
    %v193 = vadd.f32 %v189, %v191
    %v194 = vmax.f32 %v192, 0.0
    %v195 = vmax.f32 %v193, 0.0
    %v196 = vrot.slane %v194, 1
    %v197 = vrot.slane %v195, 1
    %v198 = vsel %vm45, %v196, %v197
    %v199 = vsel %vm45, %v197, %v196
    %v200 = vmax.f32 %v194, %v198
    %v201 = vmax.f32 %v195, %v199
    %v202 = vmul.f32 %v200, %v84
    %v203 = vmul.f32 %v201, %v85
    %v204 = vadd.f32 %v202, %v203
    %v205 = vrot.slane %v204, 4
    %v206 = vadd.f32 %v204, %v205
    %v207 = vrot.slane %v206, 2
    %v208 = vadd.f32 %v206, %v207
    %v209 = vrot.slane %v208, 1
    %v210 = vadd.f32 %v208, %v209
    %s211 = sld [smem:[#allocation6 + $0x42]]
    %v212 = vstv %s211
    %v213 = vmul.f32 %v210, %v212
    %v214 = vadd.f32 %v169, %v213
    %s215 = sld [smem:[#allocation6 + $0x52]]
    %v216 = vstv %s215
    %v217 = vmul.f32 %v210, %v216
    %v218 = vadd.f32 %v173, %v217
    %s219 = sld [smem:[#allocation6 + $0x9]]
    %v220 = vstv %s219
    %v221 = vmul.f32 %v39, %v220
    %v222 = vmul.f32 %v40, %v220
    %s223 = sld [smem:[#allocation6 + $0xa]]
    %v224 = vstv %s223
    %v225 = vmul.f32 %v46, %v224
    %v226 = vmul.f32 %v47, %v224
    %v227 = vadd.f32 %v221, %v225
    %v228 = vadd.f32 %v222, %v226
    %s229 = sld [smem:[#allocation6 + $0xb]]
    %v230 = vstv %s229
    %v231 = vmul.f32 %v51, %v230
    %v232 = vmul.f32 %v52, %v230
    %v233 = vadd.f32 %v227, %v231
    %v234 = vadd.f32 %v228, %v232
    %s235 = sld [smem:[#allocation6 + $0x33]]
    %v236 = vstv %s235
    %v237 = vadd.f32 %v233, %v236
    %v238 = vadd.f32 %v234, %v236
    %v239 = vmax.f32 %v237, 0.0
    %v240 = vmax.f32 %v238, 0.0
    %v241 = vrot.slane %v239, 1
    %v242 = vrot.slane %v240, 1
    %v243 = vsel %vm45, %v241, %v242
    %v244 = vsel %vm45, %v242, %v241
    %v245 = vmax.f32 %v239, %v243
    %v246 = vmax.f32 %v240, %v244
    %v247 = vmul.f32 %v245, %v84
    %v248 = vmul.f32 %v246, %v85
    %v249 = vadd.f32 %v247, %v248
    %v250 = vrot.slane %v249, 4
    %v251 = vadd.f32 %v249, %v250
    %v252 = vrot.slane %v251, 2
    %v253 = vadd.f32 %v251, %v252
    %v254 = vrot.slane %v253, 1
    %v255 = vadd.f32 %v253, %v254
    %s256 = sld [smem:[#allocation6 + $0x43]]
    %v257 = vstv %s256
    %v258 = vmul.f32 %v255, %v257
    %v259 = vadd.f32 %v214, %v258
    %s260 = sld [smem:[#allocation6 + $0x53]]
    %v261 = vstv %s260
    %v262 = vmul.f32 %v255, %v261
    %v263 = vadd.f32 %v218, %v262
    %s264 = sld [smem:[#allocation6 + $0xc]]
    %v265 = vstv %s264
    %v266 = vmul.f32 %v39, %v265
    %v267 = vmul.f32 %v40, %v265
    %s268 = sld [smem:[#allocation6 + $0xd]]
    %v269 = vstv %s268
    %v270 = vmul.f32 %v46, %v269
    %v271 = vmul.f32 %v47, %v269
    %v272 = vadd.f32 %v266, %v270
    %v273 = vadd.f32 %v267, %v271
    %s274 = sld [smem:[#allocation6 + $0xe]]
    %v275 = vstv %s274
    %v276 = vmul.f32 %v51, %v275
    %v277 = vmul.f32 %v52, %v275
    %v278 = vadd.f32 %v272, %v276
    %v279 = vadd.f32 %v273, %v277
    %s280 = sld [smem:[#allocation6 + $0x34]]
    %v281 = vstv %s280
    %v282 = vadd.f32 %v278, %v281
    %v283 = vadd.f32 %v279, %v281
    %v284 = vmax.f32 %v282, 0.0
    %v285 = vmax.f32 %v283, 0.0
    %v286 = vrot.slane %v284, 1
    %v287 = vrot.slane %v285, 1
    %v288 = vsel %vm45, %v286, %v287
    %v289 = vsel %vm45, %v287, %v286
    %v290 = vmax.f32 %v284, %v288
    %v291 = vmax.f32 %v285, %v289
    %v292 = vmul.f32 %v290, %v84
    %v293 = vmul.f32 %v291, %v85
    %v294 = vadd.f32 %v292, %v293
    %v295 = vrot.slane %v294, 4
    %v296 = vadd.f32 %v294, %v295
    %v297 = vrot.slane %v296, 2
    %v298 = vadd.f32 %v296, %v297
    %v299 = vrot.slane %v298, 1
    %v300 = vadd.f32 %v298, %v299
    %s301 = sld [smem:[#allocation6 + $0x44]]
    %v302 = vstv %s301
    %v303 = vmul.f32 %v300, %v302
    %v304 = vadd.f32 %v259, %v303
    %s305 = sld [smem:[#allocation6 + $0x54]]
    %v306 = vstv %s305
    %v307 = vmul.f32 %v300, %v306
    %v308 = vadd.f32 %v263, %v307
    %s309 = sld [smem:[#allocation6 + $0xf]]
    %v310 = vstv %s309
    %v311 = vmul.f32 %v39, %v310
    %v312 = vmul.f32 %v40, %v310
    %s313 = sld [smem:[#allocation6 + $0x10]]
    %v314 = vstv %s313
    %v315 = vmul.f32 %v46, %v314
    %v316 = vmul.f32 %v47, %v314
    %v317 = vadd.f32 %v311, %v315
    %v318 = vadd.f32 %v312, %v316
    %s319 = sld [smem:[#allocation6 + $0x11]]
    %v320 = vstv %s319
    %v321 = vmul.f32 %v51, %v320
    %v322 = vmul.f32 %v52, %v320
    %v323 = vadd.f32 %v317, %v321
    %v324 = vadd.f32 %v318, %v322
    %s325 = sld [smem:[#allocation6 + $0x35]]
    %v326 = vstv %s325
    %v327 = vadd.f32 %v323, %v326
    %v328 = vadd.f32 %v324, %v326
    %v329 = vmax.f32 %v327, 0.0
    %v330 = vmax.f32 %v328, 0.0
    %v331 = vrot.slane %v329, 1
    %v332 = vrot.slane %v330, 1
    %v333 = vsel %vm45, %v331, %v332
    %v334 = vsel %vm45, %v332, %v331
    %v335 = vmax.f32 %v329, %v333
    %v336 = vmax.f32 %v330, %v334
    %v337 = vmul.f32 %v335, %v84
    %v338 = vmul.f32 %v336, %v85
    %v339 = vadd.f32 %v337, %v338
    %v340 = vrot.slane %v339, 4
    %v341 = vadd.f32 %v339, %v340
    %v342 = vrot.slane %v341, 2
    %v343 = vadd.f32 %v341, %v342
    %v344 = vrot.slane %v343, 1
    %v345 = vadd.f32 %v343, %v344
    %s346 = sld [smem:[#allocation6 + $0x45]]
    %v347 = vstv %s346
    %v348 = vmul.f32 %v345, %v347
    %v349 = vadd.f32 %v304, %v348
    %s350 = sld [smem:[#allocation6 + $0x55]]
    %v351 = vstv %s350
    %v352 = vmul.f32 %v345, %v351
    %v353 = vadd.f32 %v308, %v352
    %s354 = sld [smem:[#allocation6 + $0x12]]
    %v355 = vstv %s354
    %v356 = vmul.f32 %v39, %v355
    %v357 = vmul.f32 %v40, %v355
    %s358 = sld [smem:[#allocation6 + $0x13]]
    %v359 = vstv %s358
    %v360 = vmul.f32 %v46, %v359
    %v361 = vmul.f32 %v47, %v359
    %v362 = vadd.f32 %v356, %v360
    %v363 = vadd.f32 %v357, %v361
    %s364 = sld [smem:[#allocation6 + $0x14]]
    %v365 = vstv %s364
    %v366 = vmul.f32 %v51, %v365
    %v367 = vmul.f32 %v52, %v365
    %v368 = vadd.f32 %v362, %v366
    %v369 = vadd.f32 %v363, %v367
    %s370 = sld [smem:[#allocation6 + $0x36]]
    %v371 = vstv %s370
    %v372 = vadd.f32 %v368, %v371
    %v373 = vadd.f32 %v369, %v371
    %v374 = vmax.f32 %v372, 0.0
    %v375 = vmax.f32 %v373, 0.0
    %v376 = vrot.slane %v374, 1
    %v377 = vrot.slane %v375, 1
    %v378 = vsel %vm45, %v376, %v377
    %v379 = vsel %vm45, %v377, %v376
    %v380 = vmax.f32 %v374, %v378
    %v381 = vmax.f32 %v375, %v379
    %v382 = vmul.f32 %v380, %v84
    %v383 = vmul.f32 %v381, %v85
    %v384 = vadd.f32 %v382, %v383
    %v385 = vrot.slane %v384, 4
    %v386 = vadd.f32 %v384, %v385
    %v387 = vrot.slane %v386, 2
    %v388 = vadd.f32 %v386, %v387
    %v389 = vrot.slane %v388, 1
    %v390 = vadd.f32 %v388, %v389
    %s391 = sld [smem:[#allocation6 + $0x46]]
    %v392 = vstv %s391
    %v393 = vmul.f32 %v390, %v392
    %v394 = vadd.f32 %v349, %v393
    %s395 = sld [smem:[#allocation6 + $0x56]]
    %v396 = vstv %s395
    %v397 = vmul.f32 %v390, %v396
    %v398 = vadd.f32 %v353, %v397
    %s399 = sld [smem:[#allocation6 + $0x15]]
    %v400 = vstv %s399
    %v401 = vmul.f32 %v39, %v400
    %v402 = vmul.f32 %v40, %v400
    %s403 = sld [smem:[#allocation6 + $0x16]]
    %v404 = vstv %s403
    %v405 = vmul.f32 %v46, %v404
    %v406 = vmul.f32 %v47, %v404
    %v407 = vadd.f32 %v401, %v405
    %v408 = vadd.f32 %v402, %v406
    %s409 = sld [smem:[#allocation6 + $0x17]]
    %v410 = vstv %s409
    %v411 = vmul.f32 %v51, %v410
    %v412 = vmul.f32 %v52, %v410
    %v413 = vadd.f32 %v407, %v411
    %v414 = vadd.f32 %v408, %v412
    %s415 = sld [smem:[#allocation6 + $0x37]]
    %v416 = vstv %s415
    %v417 = vadd.f32 %v413, %v416
    %v418 = vadd.f32 %v414, %v416
    %v419 = vmax.f32 %v417, 0.0
    %v420 = vmax.f32 %v418, 0.0
    %v421 = vrot.slane %v419, 1
    %v422 = vrot.slane %v420, 1
    %v423 = vsel %vm45, %v421, %v422
    %v424 = vsel %vm45, %v422, %v421
    %v425 = vmax.f32 %v419, %v423
    %v426 = vmax.f32 %v420, %v424
    %v427 = vmul.f32 %v425, %v84
    %v428 = vmul.f32 %v426, %v85
    %v429 = vadd.f32 %v427, %v428
    %v430 = vrot.slane %v429, 4
    %v431 = vadd.f32 %v429, %v430
    %v432 = vrot.slane %v431, 2
    %v433 = vadd.f32 %v431, %v432
    %v434 = vrot.slane %v433, 1
    %v435 = vadd.f32 %v433, %v434
    %s436 = sld [smem:[#allocation6 + $0x47]]
    %v437 = vstv %s436
    %v438 = vmul.f32 %v435, %v437
    %v439 = vadd.f32 %v394, %v438
    %s440 = sld [smem:[#allocation6 + $0x57]]
    %v441 = vstv %s440
    %v442 = vmul.f32 %v435, %v441
    %v443 = vadd.f32 %v398, %v442
    %s444 = sld [smem:[#allocation6 + $0x18]]
    %v445 = vstv %s444
    %v446 = vmul.f32 %v39, %v445
    %v447 = vmul.f32 %v40, %v445
    %s448 = sld [smem:[#allocation6 + $0x19]]
    %v449 = vstv %s448
    %v450 = vmul.f32 %v46, %v449
    %v451 = vmul.f32 %v47, %v449
    %v452 = vadd.f32 %v446, %v450
    %v453 = vadd.f32 %v447, %v451
    %s454 = sld [smem:[#allocation6 + $0x1a]]
    %v455 = vstv %s454
    %v456 = vmul.f32 %v51, %v455
    %v457 = vmul.f32 %v52, %v455
    %v458 = vadd.f32 %v452, %v456
    %v459 = vadd.f32 %v453, %v457
    %s460 = sld [smem:[#allocation6 + $0x38]]
    %v461 = vstv %s460
    %v462 = vadd.f32 %v458, %v461
    %v463 = vadd.f32 %v459, %v461
    %v464 = vmax.f32 %v462, 0.0
    %v465 = vmax.f32 %v463, 0.0
    %v466 = vrot.slane %v464, 1
    %v467 = vrot.slane %v465, 1
    %v468 = vsel %vm45, %v466, %v467
    %v469 = vsel %vm45, %v467, %v466
    %v470 = vmax.f32 %v464, %v468
    %v471 = vmax.f32 %v465, %v469
    %v472 = vmul.f32 %v470, %v84
    %v473 = vmul.f32 %v471, %v85
    %v474 = vadd.f32 %v472, %v473
    %v475 = vrot.slane %v474, 4
    %v476 = vadd.f32 %v474, %v475
    %v477 = vrot.slane %v476, 2
    %v478 = vadd.f32 %v476, %v477
    %v479 = vrot.slane %v478, 1
    %v480 = vadd.f32 %v478, %v479
    %s481 = sld [smem:[#allocation6 + $0x48]]
    %v482 = vstv %s481
    %v483 = vmul.f32 %v480, %v482
    %v484 = vadd.f32 %v439, %v483
    %s485 = sld [smem:[#allocation6 + $0x58]]
    %v486 = vstv %s485
    %v487 = vmul.f32 %v480, %v486
    %v488 = vadd.f32 %v443, %v487
    %s489 = sld [smem:[#allocation6 + $0x1b]]
    %v490 = vstv %s489
    %v491 = vmul.f32 %v39, %v490
    %v492 = vmul.f32 %v40, %v490
    %s493 = sld [smem:[#allocation6 + $0x1c]]
    %v494 = vstv %s493
    %v495 = vmul.f32 %v46, %v494
    %v496 = vmul.f32 %v47, %v494
    %v497 = vadd.f32 %v491, %v495
    %v498 = vadd.f32 %v492, %v496
    %s499 = sld [smem:[#allocation6 + $0x1d]]
    %v500 = vstv %s499
    %v501 = vmul.f32 %v51, %v500
    %v502 = vmul.f32 %v52, %v500
    %v503 = vadd.f32 %v497, %v501
    %v504 = vadd.f32 %v498, %v502
    %s505 = sld [smem:[#allocation6 + $0x39]]
    %v506 = vstv %s505
    %v507 = vadd.f32 %v503, %v506
    %v508 = vadd.f32 %v504, %v506
    %v509 = vmax.f32 %v507, 0.0
    %v510 = vmax.f32 %v508, 0.0
    %v511 = vrot.slane %v509, 1
    %v512 = vrot.slane %v510, 1
    %v513 = vsel %vm45, %v511, %v512
    %v514 = vsel %vm45, %v512, %v511
    %v515 = vmax.f32 %v509, %v513
    %v516 = vmax.f32 %v510, %v514
    %v517 = vmul.f32 %v515, %v84
    %v518 = vmul.f32 %v516, %v85
    %v519 = vadd.f32 %v517, %v518
    %v520 = vrot.slane %v519, 4
    %v521 = vadd.f32 %v519, %v520
    %v522 = vrot.slane %v521, 2
    %v523 = vadd.f32 %v521, %v522
    %v524 = vrot.slane %v523, 1
    %v525 = vadd.f32 %v523, %v524
    %s526 = sld [smem:[#allocation6 + $0x49]]
    %v527 = vstv %s526
    %v528 = vmul.f32 %v525, %v527
    %v529 = vadd.f32 %v484, %v528
    %s530 = sld [smem:[#allocation6 + $0x59]]
    %v531 = vstv %s530
    %v532 = vmul.f32 %v525, %v531
    %v533 = vadd.f32 %v488, %v532
    %s534 = sld [smem:[#allocation6 + $0x1e]]
    %v535 = vstv %s534
    %v536 = vmul.f32 %v39, %v535
    %v537 = vmul.f32 %v40, %v535
    %s538 = sld [smem:[#allocation6 + $0x1f]]
    %v539 = vstv %s538
    %v540 = vmul.f32 %v46, %v539
    %v541 = vmul.f32 %v47, %v539
    %v542 = vadd.f32 %v536, %v540
    %v543 = vadd.f32 %v537, %v541
    %s544 = sld [smem:[#allocation6 + $0x20]]
    %v545 = vstv %s544
    %v546 = vmul.f32 %v51, %v545
    %v547 = vmul.f32 %v52, %v545
    %v548 = vadd.f32 %v542, %v546
    %v549 = vadd.f32 %v543, %v547
    %s550 = sld [smem:[#allocation6 + $0x3a]]
    %v551 = vstv %s550
    %v552 = vadd.f32 %v548, %v551
    %v553 = vadd.f32 %v549, %v551
    %v554 = vmax.f32 %v552, 0.0
    %v555 = vmax.f32 %v553, 0.0
    %v556 = vrot.slane %v554, 1
    %v557 = vrot.slane %v555, 1
    %v558 = vsel %vm45, %v556, %v557
    %v559 = vsel %vm45, %v557, %v556
    %v560 = vmax.f32 %v554, %v558
    %v561 = vmax.f32 %v555, %v559
    %v562 = vmul.f32 %v560, %v84
    %v563 = vmul.f32 %v561, %v85
    %v564 = vadd.f32 %v562, %v563
    %v565 = vrot.slane %v564, 4
    %v566 = vadd.f32 %v564, %v565
    %v567 = vrot.slane %v566, 2
    %v568 = vadd.f32 %v566, %v567
    %v569 = vrot.slane %v568, 1
    %v570 = vadd.f32 %v568, %v569
    %s571 = sld [smem:[#allocation6 + $0x4a]]
    %v572 = vstv %s571
    %v573 = vmul.f32 %v570, %v572
    %v574 = vadd.f32 %v529, %v573
    %s575 = sld [smem:[#allocation6 + $0x5a]]
    %v576 = vstv %s575
    %v577 = vmul.f32 %v570, %v576
    %v578 = vadd.f32 %v533, %v577
    %s579 = sld [smem:[#allocation6 + $0x21]]
    %v580 = vstv %s579
    %v581 = vmul.f32 %v39, %v580
    %v582 = vmul.f32 %v40, %v580
    %s583 = sld [smem:[#allocation6 + $0x22]]
    %v584 = vstv %s583
    %v585 = vmul.f32 %v46, %v584
    %v586 = vmul.f32 %v47, %v584
    %v587 = vadd.f32 %v581, %v585
    %v588 = vadd.f32 %v582, %v586
    %s589 = sld [smem:[#allocation6 + $0x23]]
    %v590 = vstv %s589
    %v591 = vmul.f32 %v51, %v590
    %v592 = vmul.f32 %v52, %v590
    %v593 = vadd.f32 %v587, %v591
    %v594 = vadd.f32 %v588, %v592
    %s595 = sld [smem:[#allocation6 + $0x3b]]
    %v596 = vstv %s595
    %v597 = vadd.f32 %v593, %v596
    %v598 = vadd.f32 %v594, %v596
    %v599 = vmax.f32 %v597, 0.0
    %v600 = vmax.f32 %v598, 0.0
    %v601 = vrot.slane %v599, 1
    %v602 = vrot.slane %v600, 1
    %v603 = vsel %vm45, %v601, %v602
    %v604 = vsel %vm45, %v602, %v601
    %v605 = vmax.f32 %v599, %v603
    %v606 = vmax.f32 %v600, %v604
    %v607 = vmul.f32 %v605, %v84
    %v608 = vmul.f32 %v606, %v85
    %v609 = vadd.f32 %v607, %v608
    %v610 = vrot.slane %v609, 4
    %v611 = vadd.f32 %v609, %v610
    %v612 = vrot.slane %v611, 2
    %v613 = vadd.f32 %v611, %v612
    %v614 = vrot.slane %v613, 1
    %v615 = vadd.f32 %v613, %v614
    %s616 = sld [smem:[#allocation6 + $0x4b]]
    %v617 = vstv %s616
    %v618 = vmul.f32 %v615, %v617
    %v619 = vadd.f32 %v574, %v618
    %s620 = sld [smem:[#allocation6 + $0x5b]]
    %v621 = vstv %s620
    %v622 = vmul.f32 %v615, %v621
    %v623 = vadd.f32 %v578, %v622
    %s624 = sld [smem:[#allocation6 + $0x24]]
    %v625 = vstv %s624
    %v626 = vmul.f32 %v39, %v625
    %v627 = vmul.f32 %v40, %v625
    %s628 = sld [smem:[#allocation6 + $0x25]]
    %v629 = vstv %s628
    %v630 = vmul.f32 %v46, %v629
    %v631 = vmul.f32 %v47, %v629
    %v632 = vadd.f32 %v626, %v630
    %v633 = vadd.f32 %v627, %v631
    %s634 = sld [smem:[#allocation6 + $0x26]]
    %v635 = vstv %s634
    %v636 = vmul.f32 %v51, %v635
    %v637 = vmul.f32 %v52, %v635
    %v638 = vadd.f32 %v632, %v636
    %v639 = vadd.f32 %v633, %v637
    %s640 = sld [smem:[#allocation6 + $0x3c]]
    %v641 = vstv %s640
    %v642 = vadd.f32 %v638, %v641
    %v643 = vadd.f32 %v639, %v641
    %v644 = vmax.f32 %v642, 0.0
    %v645 = vmax.f32 %v643, 0.0
    %v646 = vrot.slane %v644, 1
    %v647 = vrot.slane %v645, 1
    %v648 = vsel %vm45, %v646, %v647
    %v649 = vsel %vm45, %v647, %v646
    %v650 = vmax.f32 %v644, %v648
    %v651 = vmax.f32 %v645, %v649
    %v652 = vmul.f32 %v650, %v84
    %v653 = vmul.f32 %v651, %v85
    %v654 = vadd.f32 %v652, %v653
    %v655 = vrot.slane %v654, 4
    %v656 = vadd.f32 %v654, %v655
    %v657 = vrot.slane %v656, 2
    %v658 = vadd.f32 %v656, %v657
    %v659 = vrot.slane %v658, 1
    %v660 = vadd.f32 %v658, %v659
    %s661 = sld [smem:[#allocation6 + $0x4c]]
    %v662 = vstv %s661
    %v663 = vmul.f32 %v660, %v662
    %v664 = vadd.f32 %v619, %v663
    %s665 = sld [smem:[#allocation6 + $0x5c]]
    %v666 = vstv %s665
    %v667 = vmul.f32 %v660, %v666
    %v668 = vadd.f32 %v623, %v667
    %s669 = sld [smem:[#allocation6 + $0x27]]
    %v670 = vstv %s669
    %v671 = vmul.f32 %v39, %v670
    %v672 = vmul.f32 %v40, %v670
    %s673 = sld [smem:[#allocation6 + $0x28]]
    %v674 = vstv %s673
    %v675 = vmul.f32 %v46, %v674
    %v676 = vmul.f32 %v47, %v674
    %v677 = vadd.f32 %v671, %v675
    %v678 = vadd.f32 %v672, %v676
    %s679 = sld [smem:[#allocation6 + $0x29]]
    %v680 = vstv %s679
    %v681 = vmul.f32 %v51, %v680
    %v682 = vmul.f32 %v52, %v680
    %v683 = vadd.f32 %v677, %v681
    %v684 = vadd.f32 %v678, %v682
    %s685 = sld [smem:[#allocation6 + $0x3d]]
    %v686 = vstv %s685
    %v687 = vadd.f32 %v683, %v686
    %v688 = vadd.f32 %v684, %v686
    %v689 = vmax.f32 %v687, 0.0
    %v690 = vmax.f32 %v688, 0.0
    %v691 = vrot.slane %v689, 1
    %v692 = vrot.slane %v690, 1
    %v693 = vsel %vm45, %v691, %v692
    %v694 = vsel %vm45, %v692, %v691
    %v695 = vmax.f32 %v689, %v693
    %v696 = vmax.f32 %v690, %v694
    %v697 = vmul.f32 %v695, %v84
    %v698 = vmul.f32 %v696, %v85
    %v699 = vadd.f32 %v697, %v698
    %v700 = vrot.slane %v699, 4
    %v701 = vadd.f32 %v699, %v700
    %v702 = vrot.slane %v701, 2
    %v703 = vadd.f32 %v701, %v702
    %v704 = vrot.slane %v703, 1
    %v705 = vadd.f32 %v703, %v704
    %s706 = sld [smem:[#allocation6 + $0x4d]]
    %v707 = vstv %s706
    %v708 = vmul.f32 %v705, %v707
    %v709 = vadd.f32 %v664, %v708
    %s710 = sld [smem:[#allocation6 + $0x5d]]
    %v711 = vstv %s710
    %v712 = vmul.f32 %v705, %v711
    %v713 = vadd.f32 %v668, %v712
    %s714 = sld [smem:[#allocation6 + $0x2a]]
    %v715 = vstv %s714
    %v716 = vmul.f32 %v39, %v715
    %v717 = vmul.f32 %v40, %v715
    %s718 = sld [smem:[#allocation6 + $0x2b]]
    %v719 = vstv %s718
    %v720 = vmul.f32 %v46, %v719
    %v721 = vmul.f32 %v47, %v719
    %v722 = vadd.f32 %v716, %v720
    %v723 = vadd.f32 %v717, %v721
    %s724 = sld [smem:[#allocation6 + $0x2c]]
    %v725 = vstv %s724
    %v726 = vmul.f32 %v51, %v725
    %v727 = vmul.f32 %v52, %v725
    %v728 = vadd.f32 %v722, %v726
    %v729 = vadd.f32 %v723, %v727
    %s730 = sld [smem:[#allocation6 + $0x3e]]
    %v731 = vstv %s730
    %v732 = vadd.f32 %v728, %v731
    %v733 = vadd.f32 %v729, %v731
    %v734 = vmax.f32 %v732, 0.0
    %v735 = vmax.f32 %v733, 0.0
    %v736 = vrot.slane %v734, 1
    %v737 = vrot.slane %v735, 1
    %v738 = vsel %vm45, %v736, %v737
    %v739 = vsel %vm45, %v737, %v736
    %v740 = vmax.f32 %v734, %v738
    %v741 = vmax.f32 %v735, %v739
    %v742 = vmul.f32 %v740, %v84
    %v743 = vmul.f32 %v741, %v85
    %v744 = vadd.f32 %v742, %v743
    %v745 = vrot.slane %v744, 4
    %v746 = vadd.f32 %v744, %v745
    %v747 = vrot.slane %v746, 2
    %v748 = vadd.f32 %v746, %v747
    %v749 = vrot.slane %v748, 1
    %v750 = vadd.f32 %v748, %v749
    %s751 = sld [smem:[#allocation6 + $0x4e]]
    %v752 = vstv %s751
    %v753 = vmul.f32 %v750, %v752
    %v754 = vadd.f32 %v709, %v753
    %s755 = sld [smem:[#allocation6 + $0x5e]]
    %v756 = vstv %s755
    %v757 = vmul.f32 %v750, %v756
    %v758 = vadd.f32 %v713, %v757
    %s759 = sld [smem:[#allocation6 + $0x2d]]
    %v760 = vstv %s759
    %v761 = vmul.f32 %v39, %v760
    %v762 = vmul.f32 %v40, %v760
    %s763 = sld [smem:[#allocation6 + $0x2e]]
    %v764 = vstv %s763
    %v765 = vmul.f32 %v46, %v764
    %v766 = vmul.f32 %v47, %v764
    %v767 = vadd.f32 %v761, %v765
    %v768 = vadd.f32 %v762, %v766
    %s769 = sld [smem:[#allocation6 + $0x2f]]
    %v770 = vstv %s769
    %v771 = vmul.f32 %v51, %v770
    %v772 = vmul.f32 %v52, %v770
    %v773 = vadd.f32 %v767, %v771
    %v774 = vadd.f32 %v768, %v772
    %s775 = sld [smem:[#allocation6 + $0x3f]]
    %v776 = vstv %s775
    %v777 = vadd.f32 %v773, %v776
    %v778 = vadd.f32 %v774, %v776
    %v779 = vmax.f32 %v777, 0.0
    %v780 = vmax.f32 %v778, 0.0
    %v781 = vrot.slane %v779, 1
    %v782 = vrot.slane %v780, 1
    %v783 = vsel %vm45, %v781, %v782
    %v784 = vsel %vm45, %v782, %v781
    %v785 = vmax.f32 %v779, %v783
    %v786 = vmax.f32 %v780, %v784
    %v787 = vmul.f32 %v785, %v84
    %v788 = vmul.f32 %v786, %v85
    %v789 = vadd.f32 %v787, %v788
    %v790 = vrot.slane %v789, 4
    %v791 = vadd.f32 %v789, %v790
    %v792 = vrot.slane %v791, 2
    %v793 = vadd.f32 %v791, %v792
    %v794 = vrot.slane %v793, 1
    %v795 = vadd.f32 %v793, %v794
    %s796 = sld [smem:[#allocation6 + $0x4f]]
    %v797 = vstv %s796
    %v798 = vmul.f32 %v795, %v797
    %v799 = vadd.f32 %v754, %v798
    %s800 = sld [smem:[#allocation6 + $0x5f]]
    %v801 = vstv %s800
    %v802 = vmul.f32 %v795, %v801
    %v803 = vadd.f32 %v758, %v802
    %s804 = sld [smem:[#allocation6 + $0x60]]
    %v805 = vstv %s804
    %v806 = vadd.f32 %v799, %v805
    %s807 = sld [smem:[#allocation6 + $0x61]]
    %v808 = vstv %s807
    %v809 = vadd.f32 %v803, %v808
    %vm810 = vcmask 1040384
    %v811 = vsel %vm810, %v806, %v809
    %812 = vst [vmem:[#allocation7] sm:$0x3] %v811
    // Predicated region
    $region18: #{tpu_custom_call.1} parent=1 // pred_check
      _
    $region19: #{tpu_custom_call.1} parent=1 // pred_check_branch
      %814 = sbr.rel (0) target = $region21
    $region20: #{tpu_custom_call.1} parent=1 // pred_region
      %s816 = ssub.s32 32, 32
      %817 = vsyncadd [#allocation4], %s816
      %s819 = sshll.u32 [#allocation7], 4
      %s820 = int_to_ptr.vmem [resolvable:$true] %s819
      %822 = dma.vmem_to_hbm [thread:$0]  %s820, 32, %s2, [#allocation4]
    $region21: #{tpu_custom_call.1} parent=1 // pred_fallthru
      _
    // Predicated region
    $region22: #{tpu_custom_call.1} parent=1 // pred_check
      _
    $region23: #{tpu_custom_call.1} parent=1 // pred_check_branch
      %824 = sbr.rel (0) target = $region25
    $region24: #{tpu_custom_call.1} parent=1 // pred_region
      %825 = dma.done [#allocation4], 32
    $region25: #{tpu_custom_call.1} parent=1 // pred_fallthru
      _
    %826 = vsyncpa [#allocation3], 1
    %827 = vsyncpa [#allocation4], 1
    %828 = vsyncpa [#allocation5], 1

</llo_original>
